<compile_context>
chip_gen: v7x
topology: tpu7x:2x2x1
jax: 0.10.0
libtpu: 0.0.40
codegen_flags: <defaults>
</compile_context>

<pallas_src>
import jax
import jax.numpy as jnp
from jax.experimental import pallas as pl
from jax.experimental.pallas import tpu as pltpu


HIDDEN = 256  # fixed by the module definition (l1/l2/l4/l5 are 256-wide)


def critic_kernel(
    sa_ref,                     # f32 [S+A, tm]   (batch on lanes)
    w1_ref, b1_ref,             # bf16 [2H, S+A], f32 [2H, 1]   merged l1/l4
    w2_ref, b2_ref,             # bf16 [H, H],    f32 [H, 1]    l2
    w3_ref, b3_ref,             # f32  [H, 1],    f32 [1, 1]    l3
    w5_ref, b5_ref,             # bf16 [H, H],    f32 [H, 1]    l5
    w6_ref, b6_ref,             # f32  [H, 1],    f32 [1, 1]    l6
    q_ref,                      # f32 [2, tm]  (row 0 = q1, row 1 = q2)
):
    """One batch tile of the Critic forward, both Q heads, feature-major."""
    H = w2_ref.shape[0]

    sa = sa_ref[...].astype(jnp.bfloat16)                       # [S+A, tm]

    # Merged layer 1 for both heads: one MXU push sequence.
    h = jnp.dot(w1_ref[...], sa, preferred_element_type=jnp.float32)   # [2H, tm]
    h = jnp.maximum(h + b1_ref[...], 0.0)
    h1 = h[:H, :].astype(jnp.bfloat16)                          # head 1, [H, tm]
    h2 = h[H:, :].astype(jnp.bfloat16)                          # head 2, [H, tm]

    # Layer 2 per head (LHS weights differ, so they stay separate).
    g1 = jnp.dot(w2_ref[...], h1, preferred_element_type=jnp.float32)  # [H, tm]
    g1 = jnp.maximum(g1 + b2_ref[...], 0.0)
    g2 = jnp.dot(w5_ref[...], h2, preferred_element_type=jnp.float32)  # [H, tm]
    g2 = jnp.maximum(g2 + b5_ref[...], 0.0)

    # Layer 3 (out_features = 1): VPU multiply + sublane reduction, result is
    # already a lane-dense [1, tm] row -> unmasked full-width stores.
    q1 = jnp.sum(g1 * w3_ref[...], axis=0, keepdims=True) + b3_ref[...]
    q2 = jnp.sum(g2 * w6_ref[...], axis=0, keepdims=True) + b6_ref[...]
    q_ref[0:1, :] = q1.astype(q_ref.dtype)
    q_ref[1:2, :] = q2.astype(q_ref.dtype)


def prepare_critic_params(params):
    """One-time prep (hoisted out of the per-call path).

    params: PyTorch-convention dict, w_i: [out, in], b_i: [out], i in 1..6.
    In the feature-major kernel the [out, in] weights are used as-is; only a
    bf16 cast, the l1/l4 merge, and bias column reshapes are needed.
    """
    col = lambda x: jnp.asarray(x, jnp.float32).reshape(-1, 1)
    w1m = jnp.concatenate([params["w1"], params["w4"]], axis=0).astype(jnp.bfloat16)
    b1m = jnp.concatenate([col(params["b1"]), col(params["b4"])], axis=0)
    return (
        w1m, b1m,                                               # [2H,S+A], [2H,1]
        jnp.asarray(params["w2"], jnp.bfloat16), col(params["b2"]),
        col(params["w3"]), col(params["b3"]),
        jnp.asarray(params["w5"], jnp.bfloat16), col(params["b5"]),
        col(params["w6"]), col(params["b6"]),
    )


def critic_forward(state, action, prepped, *, tm=128):
    """Pallas wrapper for Critic.forward.

    state: [B, state_dim] f32, action: [B, action_dim] f32.
    prepped: output of `prepare_critic_params`.
    Returns (q1, q2), each [B, 1] float32.
    """
    B, S = state.shape
    A = action.shape[1]
    (w1m, b1m, w2, b2, w3, b3, w5, b5, w6, b6) = prepped
    H = w2.shape[0]

    # Lane-dense blocks (input sa^T and output (2,B)) need tm % 128 == 0 or
    # tm == B.  Default 128 keeps >=2 grid steps whenever B >= 256 so v7x
    # megacore sharding engages, and keeps f32 intermediates small.
    if B <= 128:
        tm = B
    else:
        tm = max(128, (min(tm, B) // 128) * 128)
    grid = (pl.cdiv(B, tm),)

    # Fused torch.cat + transpose to feature-major; [S+A, B] f32 is KB-scale
    # and fuses with upstream producers under jit.
    sa_t = jnp.concatenate([state, action], axis=1).T           # [S+A, B]

    resident = lambda shp: pl.BlockSpec(shp, lambda i: (0, 0))  # VMEM-resident

    q_all = pl.pallas_call(
        critic_kernel,
        out_shape=jax.ShapeDtypeStruct((2, B), jnp.float32),
        grid=grid,
        in_specs=[
            pl.BlockSpec((S + A, tm), lambda i: (0, i)),        # streamed tile
            resident((2 * H, S + A)), resident((2 * H, 1)),     # merged l1/l4
            resident((H, H)), resident((H, 1)),                 # l2
            resident((H, 1)), resident((1, 1)),                 # l3
            resident((H, H)), resident((H, 1)),                 # l5
            resident((H, 1)), resident((1, 1)),                 # l6
        ],
        out_specs=pl.BlockSpec((2, tm), lambda i: (0, i)),
        compiler_params=pltpu.CompilerParams(
            dimension_semantics=("parallel",),      # megacore-shard batch tiles
            vmem_limit_bytes=16 * 1024 * 1024,      # footprint ~few MB; v7x-safe
        ),
    )(sa_t, w1m, b1m, w2, b2, w3, b3, w5, b5, w6, b6)

    q = q_all.T                                                  # [B, 2]
    return q[:, 0:1], q[:, 1:2]


def init_critic_params(key, state_dim, action_dim, hidden=HIDDEN):
    """PyTorch nn.Linear default init: U(-1/sqrt(in), 1/sqrt(in))."""
    dims = [
        (hidden, state_dim + action_dim),  # l1
        (hidden, hidden),                  # l2
        (1, hidden),                       # l3
        (hidden, state_dim + action_dim),  # l4
        (hidden, hidden),                  # l5
        (1, hidden),                       # l6
    ]
    params = {}
    keys = jax.random.split(key, 2 * len(dims))
    for i, (out_d, in_d) in enumerate(dims):
        bound = 1.0 / jnp.sqrt(jnp.float32(in_d))
        params[f"w{i + 1}"] = jax.random.uniform(
            keys[2 * i], (out_d, in_d), jnp.float32, -bound, bound)
        params[f"b{i + 1}"] = jax.random.uniform(
            keys[2 * i + 1], (out_d,), jnp.float32, -bound, bound)
    return params


if __name__ == "__main__":
    # Small shapes consistent with the module (hidden width 256 is fixed by it).
    # B=256 with tm=128 -> grid of 2 batch tiles (exercises pipelining and the
    # v7x two-TensorCore "parallel" path).
    batch, state_dim, action_dim = 256, 17, 6

    key = jax.random.PRNGKey(0)
    k_s, k_a, k_p = jax.random.split(key, 3)
    state = jax.random.normal(k_s, (batch, state_dim), jnp.float32)
    action = jax.random.normal(k_a, (batch, action_dim), jnp.float32)
    params = init_critic_params(k_p, state_dim, action_dim)

    # Weight prep done once, outside the per-call path; wrapper is jitted so
    # the tiny concat/transpose layout plumbing fuses.
    prepped = prepare_critic_params(params)
    critic_apply = jax.jit(critic_forward, static_argnames=("tm",))

    q1, q2 = critic_apply(state, action, prepped)
    q1, q2 = jax.block_until_ready((q1, q2))

    # Pure-JAX f32 reference (PyTorch semantics). Kernel uses bf16 weights /
    # activations with f32 accumulation, so tolerance is loosened accordingly.
    sa = jnp.concatenate([state, action], axis=1)

    def ref_head(w1, b1, w2, b2, w3, b3):
        h1 = jnp.maximum(sa @ w1.T + b1, 0.0)
        h2 = jnp.maximum(h1 @ w2.T + b2, 0.0)
        return h2 @ w3.T + b3

    q1_ref = ref_head(params["w1"], params["b1"], params["w2"], params["b2"],
                      params["w3"], params["b3"])
    q2_ref = ref_head(params["w4"], params["b4"], params["w5"], params["b5"],
                      params["w6"], params["b6"])

    assert q1.shape == (batch, 1) and q2.shape == (batch, 1)
    assert jnp.allclose(q1, q1_ref, atol=5e-2, rtol=5e-2)
    assert jnp.allclose(q2, q2_ref, atol=5e-2, rtol=5e-2)

    print("KERNEL_OK")
</pallas_src>

<mosaic_0001>
module attributes {stable_mosaic.version = 11 : i64} {
  func.func @critic_kernel(%arg0: i32, %arg1: memref<23x128xf32, #tpu.memory_space<vmem>>, %arg2: memref<512x23xbf16, #tpu.memory_space<vmem>>, %arg3: memref<512x1xf32, #tpu.memory_space<vmem>>, %arg4: memref<256x256xbf16, #tpu.memory_space<vmem>>, %arg5: memref<256x1xf32, #tpu.memory_space<vmem>>, %arg6: memref<256x1xf32, #tpu.memory_space<vmem>>, %arg7: memref<1x1xf32, #tpu.memory_space<vmem>>, %arg8: memref<256x256xbf16, #tpu.memory_space<vmem>>, %arg9: memref<256x1xf32, #tpu.memory_space<vmem>>, %arg10: memref<256x1xf32, #tpu.memory_space<vmem>>, %arg11: memref<1x1xf32, #tpu.memory_space<vmem>>, %arg12: memref<2x128xf32, #tpu.memory_space<vmem>>) attributes {dimension_semantics = [#tpu.dimension_semantics<parallel>], iteration_bounds = array<i64: 2>, scalar_prefetch = 0 : i64, scratch_operands = 0 : i64, tpu.core_type = #tpu.core_type<tc>, window_params = [{transform_indices = @transform_0, window_bounds = array<i64: 23, 128>}, {pipeline_mode = #tpu.pipeline_mode<synchronous>, transform_indices = @transform_1, window_bounds = array<i64: 512, 23>}, {pipeline_mode = #tpu.pipeline_mode<synchronous>, transform_indices = @transform_2, window_bounds = array<i64: 512, 1>}, {pipeline_mode = #tpu.pipeline_mode<synchronous>, transform_indices = @transform_3, window_bounds = array<i64: 256, 256>}, {pipeline_mode = #tpu.pipeline_mode<synchronous>, transform_indices = @transform_4, window_bounds = array<i64: 256, 1>}, {pipeline_mode = #tpu.pipeline_mode<synchronous>, transform_indices = @transform_5, window_bounds = array<i64: 256, 1>}, {pipeline_mode = #tpu.pipeline_mode<synchronous>, transform_indices = @transform_6, window_bounds = array<i64: 1, 1>}, {pipeline_mode = #tpu.pipeline_mode<synchronous>, transform_indices = @transform_7, window_bounds = array<i64: 256, 256>}, {pipeline_mode = #tpu.pipeline_mode<synchronous>, transform_indices = @transform_8, window_bounds = array<i64: 256, 1>}, {pipeline_mode = #tpu.pipeline_mode<synchronous>, transform_indices = @transform_9, window_bounds = array<i64: 256, 1>}, {pipeline_mode = #tpu.pipeline_mode<synchronous>, transform_indices = @transform_10, window_bounds = array<i64: 1, 1>}, {transform_indices = @transform_11, window_bounds = array<i64: 2, 128>}]} {
    %c0 = arith.constant 0 : index
    %c0_0 = arith.constant 0 : index
    %0 = vector.load %arg1[%c0, %c0_0] : memref<23x128xf32, #tpu.memory_space<vmem>>, vector<23x128xf32>
    %1 = arith.truncf %0 : vector<23x128xf32> to vector<23x128xbf16>
    %c0_1 = arith.constant 0 : index
    %c0_2 = arith.constant 0 : index
    %2 = vector.load %arg2[%c0_1, %c0_2] : memref<512x23xbf16, #tpu.memory_space<vmem>>, vector<512x23xbf16>
    %cst = arith.constant dense<0.000000e+00> : vector<512x128xf32>
    %3 = tpu.matmul %2, %1, %cst {dimension_numbers = #tpu.dot_dimension_numbers<[1], [0], [0], [1], [0, 0, 1, 1], [], []>} : vector<512x23xbf16>, vector<23x128xbf16>, vector<512x128xf32> -> vector<512x128xf32>
    %c0_3 = arith.constant 0 : index
    %c0_4 = arith.constant 0 : index
    %4 = vector.load %arg3[%c0_3, %c0_4] : memref<512x1xf32, #tpu.memory_space<vmem>>, vector<512x1xf32>
    %5 = vector.broadcast %4 : vector<512x1xf32> to vector<512x128xf32>
    %6 = arith.addf %3, %5 : vector<512x128xf32>
    %cst_5 = arith.constant 0.000000e+00 : f32
    %7 = vector.broadcast %cst_5 : f32 to vector<512x128xf32>
    %8 = arith.maximumf %6, %7 : vector<512x128xf32>
    %9 = vector.extract_strided_slice %8 {offsets = [0, 0], sizes = [256, 128], strides = [1, 1]} : vector<512x128xf32> to vector<256x128xf32>
    %10 = arith.truncf %9 : vector<256x128xf32> to vector<256x128xbf16>
    %11 = vector.extract_strided_slice %8 {offsets = [256, 0], sizes = [256, 128], strides = [1, 1]} : vector<512x128xf32> to vector<256x128xf32>
    %12 = arith.truncf %11 : vector<256x128xf32> to vector<256x128xbf16>
    %c0_6 = arith.constant 0 : index
    %c0_7 = arith.constant 0 : index
    %13 = vector.load %arg4[%c0_6, %c0_7] : memref<256x256xbf16, #tpu.memory_space<vmem>>, vector<256x256xbf16>
    %cst_8 = arith.constant dense<0.000000e+00> : vector<256x128xf32>
    %14 = tpu.matmul %13, %10, %cst_8 {dimension_numbers = #tpu.dot_dimension_numbers<[1], [0], [0], [1], [0, 0, 1, 1], [], []>} : vector<256x256xbf16>, vector<256x128xbf16>, vector<256x128xf32> -> vector<256x128xf32>
    %c0_9 = arith.constant 0 : index
    %c0_10 = arith.constant 0 : index
    %15 = vector.load %arg5[%c0_9, %c0_10] : memref<256x1xf32, #tpu.memory_space<vmem>>, vector<256x1xf32>
    %16 = vector.broadcast %15 : vector<256x1xf32> to vector<256x128xf32>
    %17 = arith.addf %14, %16 : vector<256x128xf32>
    %cst_11 = arith.constant 0.000000e+00 : f32
    %18 = vector.broadcast %cst_11 : f32 to vector<256x128xf32>
    %19 = arith.maximumf %17, %18 : vector<256x128xf32>
    %c0_12 = arith.constant 0 : index
    %c0_13 = arith.constant 0 : index
    %20 = vector.load %arg8[%c0_12, %c0_13] : memref<256x256xbf16, #tpu.memory_space<vmem>>, vector<256x256xbf16>
    %cst_14 = arith.constant dense<0.000000e+00> : vector<256x128xf32>
    %21 = tpu.matmul %20, %12, %cst_14 {dimension_numbers = #tpu.dot_dimension_numbers<[1], [0], [0], [1], [0, 0, 1, 1], [], []>} : vector<256x256xbf16>, vector<256x128xbf16>, vector<256x128xf32> -> vector<256x128xf32>
    %c0_15 = arith.constant 0 : index
    %c0_16 = arith.constant 0 : index
    %22 = vector.load %arg9[%c0_15, %c0_16] : memref<256x1xf32, #tpu.memory_space<vmem>>, vector<256x1xf32>
    %23 = vector.broadcast %22 : vector<256x1xf32> to vector<256x128xf32>
    %24 = arith.addf %21, %23 : vector<256x128xf32>
    %cst_17 = arith.constant 0.000000e+00 : f32
    %25 = vector.broadcast %cst_17 : f32 to vector<256x128xf32>
    %26 = arith.maximumf %24, %25 : vector<256x128xf32>
    %c0_18 = arith.constant 0 : index
    %c0_19 = arith.constant 0 : index
    %27 = vector.load %arg6[%c0_18, %c0_19] : memref<256x1xf32, #tpu.memory_space<vmem>>, vector<256x1xf32>
    %28 = vector.broadcast %27 : vector<256x1xf32> to vector<256x128xf32>
    %29 = arith.mulf %19, %28 : vector<256x128xf32>
    %cst_20 = arith.constant dense<0.000000e+00> : vector<128xf32>
    %30 = vector.multi_reduction <add>, %29, %cst_20 [0] : vector<256x128xf32> to vector<128xf32>
    %31 = vector.shape_cast %30 : vector<128xf32> to vector<1x128xf32>
    %c0_21 = arith.constant 0 : index
    %c0_22 = arith.constant 0 : index
    %32 = vector.load %arg7[%c0_21, %c0_22] : memref<1x1xf32, #tpu.memory_space<vmem>>, vector<1x1xf32>
    %33 = vector.broadcast %32 : vector<1x1xf32> to vector<1x128xf32>
    %34 = arith.addf %31, %33 : vector<1x128xf32>
    %c0_23 = arith.constant 0 : index
    %c0_24 = arith.constant 0 : index
    %35 = vector.load %arg10[%c0_23, %c0_24] : memref<256x1xf32, #tpu.memory_space<vmem>>, vector<256x1xf32>
    %36 = vector.broadcast %35 : vector<256x1xf32> to vector<256x128xf32>
    %37 = arith.mulf %26, %36 : vector<256x128xf32>
    %cst_25 = arith.constant dense<0.000000e+00> : vector<128xf32>
    %38 = vector.multi_reduction <add>, %37, %cst_25 [0] : vector<256x128xf32> to vector<128xf32>
    %39 = vector.shape_cast %38 : vector<128xf32> to vector<1x128xf32>
    %c0_26 = arith.constant 0 : index
    %c0_27 = arith.constant 0 : index
    %40 = vector.load %arg11[%c0_26, %c0_27] : memref<1x1xf32, #tpu.memory_space<vmem>>, vector<1x1xf32>
    %41 = vector.broadcast %40 : vector<1x1xf32> to vector<1x128xf32>
    %42 = arith.addf %39, %41 : vector<1x128xf32>
    %c0_28 = arith.constant 0 : index
    %c0_29 = arith.constant 0 : index
    %43 = vector.load %arg12[%c0_28, %c0_29] : memref<2x128xf32, #tpu.memory_space<vmem>>, vector<1x128xf32>
    tpu.vector_store %arg12[%c0_28, %c0_29], %34 {strides = array<i32>} : memref<2x128xf32, #tpu.memory_space<vmem>>, vector<1x128xf32>,
    %c1 = arith.constant 1 : index
    %c0_30 = arith.constant 0 : index
    %44 = vector.load %arg12[%c1, %c0_30] : memref<2x128xf32, #tpu.memory_space<vmem>>, vector<1x128xf32>
    tpu.vector_store %arg12[%c1, %c0_30], %42 {strides = array<i32>} : memref<2x128xf32, #tpu.memory_space<vmem>>, vector<1x128xf32>,
    return
  }
  func.func @transform_0(%arg0: i32) -> (i32, i32) {
    %c0_i32 = arith.constant 0 : i32
    %c0_i32_0 = arith.constant 0 : i32
    return %c0_i32, %arg0 : i32, i32
  }
  func.func @transform_1(%arg0: i32) -> (i32, i32) {
    %c0_i32 = arith.constant 0 : i32
    %c0_i32_0 = arith.constant 0 : i32
    %c0_i32_1 = arith.constant 0 : i32
    return %c0_i32, %c0_i32_0 : i32, i32
  }
  func.func @transform_2(%arg0: i32) -> (i32, i32) {
    %c0_i32 = arith.constant 0 : i32
    %c0_i32_0 = arith.constant 0 : i32
    %c0_i32_1 = arith.constant 0 : i32
    return %c0_i32, %c0_i32_0 : i32, i32
  }
  func.func @transform_3(%arg0: i32) -> (i32, i32) {
    %c0_i32 = arith.constant 0 : i32
    %c0_i32_0 = arith.constant 0 : i32
    %c0_i32_1 = arith.constant 0 : i32
    return %c0_i32, %c0_i32_0 : i32, i32
  }
  func.func @transform_4(%arg0: i32) -> (i32, i32) {
    %c0_i32 = arith.constant 0 : i32
    %c0_i32_0 = arith.constant 0 : i32
    %c0_i32_1 = arith.constant 0 : i32
    return %c0_i32, %c0_i32_0 : i32, i32
  }
  func.func @transform_5(%arg0: i32) -> (i32, i32) {
    %c0_i32 = arith.constant 0 : i32
    %c0_i32_0 = arith.constant 0 : i32
    %c0_i32_1 = arith.constant 0 : i32
    return %c0_i32, %c0_i32_0 : i32, i32
  }
  func.func @transform_6(%arg0: i32) -> (i32, i32) {
    %c0_i32 = arith.constant 0 : i32
    %c0_i32_0 = arith.constant 0 : i32
    %c0_i32_1 = arith.constant 0 : i32
    return %c0_i32, %c0_i32_0 : i32, i32
  }
  func.func @transform_7(%arg0: i32) -> (i32, i32) {
    %c0_i32 = arith.constant 0 : i32
    %c0_i32_0 = arith.constant 0 : i32
    %c0_i32_1 = arith.constant 0 : i32
    return %c0_i32, %c0_i32_0 : i32, i32
  }
  func.func @transform_8(%arg0: i32) -> (i32, i32) {
    %c0_i32 = arith.constant 0 : i32
    %c0_i32_0 = arith.constant 0 : i32
    %c0_i32_1 = arith.constant 0 : i32
    return %c0_i32, %c0_i32_0 : i32, i32
  }
  func.func @transform_9(%arg0: i32) -> (i32, i32) {
    %c0_i32 = arith.constant 0 : i32
    %c0_i32_0 = arith.constant 0 : i32
    %c0_i32_1 = arith.constant 0 : i32
    return %c0_i32, %c0_i32_0 : i32, i32
  }
  func.func @transform_10(%arg0: i32) -> (i32, i32) {
    %c0_i32 = arith.constant 0 : i32
    %c0_i32_0 = arith.constant 0 : i32
    %c0_i32_1 = arith.constant 0 : i32
    return %c0_i32, %c0_i32_0 : i32, i32
  }
  func.func @transform_11(%arg0: i32) -> (i32, i32) {
    %c0_i32 = arith.constant 0 : i32
    %c0_i32_0 = arith.constant 0 : i32
    return %c0_i32, %arg0 : i32, i32
  }
}

</mosaic_0001>

<llo_original>
// kernel: critic_forward.1
$region0: #{critic_forward.1}
  #allocation0 [shape = 'u32[]', space=smem, size = 0x4, offset = 0x4, fixed_abs, tag = 'smem constant byte address 0x4 - core index']
  #allocation1 [shape = 'u32[144,128]{1,0:T(1,128)}', space=vmem, size = 0x12000, scoped, tag = 'internal scratch']
  #allocation2 [shape = 'f32[1,1]{1,0:T(1,128)S(1)}', space=vmem, size = 0x200, scoped, tag = 'scoped memory for critic_forward.1']
  #allocation3 [shape = 'f32[1,1]{1,0:T(1,128)S(1)}', space=vmem, size = 0x200, scoped, tag = 'scoped memory for critic_forward.1']
  %s0 = inlined_call_operand.vmem [shape: f32[23,256], index: 0, kind: input, shape index: {}]
  %s1 = inlined_call_operand.vmem [shape: bf16[512,23], index: 1, kind: input, shape index: {}]
  %s2 = inlined_call_operand.vmem [shape: f32[512,1], index: 2, kind: input, shape index: {}]
  %s3 = inlined_call_operand.vmem [shape: bf16[256,256], index: 3, kind: input, shape index: {}]
  %s4 = inlined_call_operand.vmem [shape: f32[256,1], index: 4, kind: input, shape index: {}]
  %s5 = inlined_call_operand.vmem [shape: f32[256,1], index: 5, kind: input, shape index: {}]
  %s6 = inlined_call_operand.<no memory space> [shape: f32[1,1], index: 6, kind: input, shape index: {}]
  %s7 = inlined_call_operand.vmem [shape: bf16[256,256], index: 7, kind: input, shape index: {}]
  %s8 = inlined_call_operand.vmem [shape: f32[256,1], index: 8, kind: input, shape index: {}]
  %s9 = inlined_call_operand.vmem [shape: f32[256,1], index: 9, kind: input, shape index: {}]
  %s10 = inlined_call_operand.<no memory space> [shape: f32[1,1], index: 10, kind: input, shape index: {}]
  %s11 = inlined_call_operand.vmem [shape: f32[2,256], index: 11, kind: output, shape index: {}]
  %s12 = sld [smem:[#allocation0]]
  $region115: #{critic_forward.1} parent=0
    _
  %s14 = ssub.s32 1, %s12
  %s15 = scalar_select 0, %s14, %s12
  %v16 = vstv %s6
  %17 = vst [vmem:[#allocation2] sm:$0x1] %v16
  %v18 = vstv %s10
  %19 = vst [vmem:[#allocation3] sm:$0x1] %v18
  $region1: #{critic_forward.1} parent=0
    #allocation4 [shape = 'u8[24576]{0}', space=vmem, size = 0x6000, scoped, tag = 'input window, operand 0']
    loop: start=0, step=1, limit=4
    $region2: #{critic_forward.1} parent=1 // loop_pre_header
      _
    $region3: #{critic_forward.1} parent=1 // loop_header
      %s21 = sphi 0, %s25
      %p22 = scmp.ge.s32.totalorder %s21, 4
      %s31 = sphi 0, %s33
      %s34 = sphi 0, %s31
      %s35 = sphi 0, %s34
      %s51 = sphi 0, %s35
      %s55 = sphi 0, %s55
      %s57 = sphi 0, %s55
      %s58 = sphi 0, %s57
      %s72 = sphi 0, %s58
      %s76 = sphi 0, %s76
      %s78 = sphi 0, %s76
      %s79 = sphi 0, %s78
      %s93 = sphi 0, %s79
      %s97 = sphi 0, %s97
      %s99 = sphi 0, %s97
      %s100 = sphi 0, %s99
      %s114 = sphi 0, %s100
      %s118 = sphi 0, %s118
      %s120 = sphi 0, %s118
      %s121 = sphi 0, %s120
      %s135 = sphi 0, %s121
      %s139 = sphi 0, %s139
      %s141 = sphi 0, %s139
      %s142 = sphi 0, %s141
      %s156 = sphi 0, %s142
      %s160 = sphi 0, %s160
      %s162 = sphi 0, %s160
      %s163 = sphi 0, %s162
      %s177 = sphi 0, %s163
      %s181 = sphi 0, %s181
      %s183 = sphi 0, %s181
      %s184 = sphi 0, %s183
      %s198 = sphi 0, %s184
      %s202 = sphi 0, %s202
      %s204 = sphi 0, %s202
      %s205 = sphi 0, %s204
      %s219 = sphi 0, %s205
      %s223 = sphi 0, %s223
      %s225 = sphi 0, %s223
      %s226 = sphi 0, %s225
      %s240 = sphi 0, %s226
      %s244 = sphi 0, %s244
      %s246 = sphi 0, %s244
      %s247 = sphi 0, %s246
      %s261 = sphi 0, %s247
      %s267 = sphi 0, %s269
      %s270 = sphi 0, %s267
      %s271 = sphi 0, %s270
      %s287 = sphi 0, %s271
    $region4: #{critic_forward.1} parent=1 // loop_header_branch
      %24 = sbr.rel (%p22) target = $region8
    $region5: #{critic_forward.1} parent=1 // loop_body
      %s26 = ssub.s32 %s21, 1
      %s27 = ssub.s32 %s21, 2
      %s28 = sadd.s32 %s21, 1
      %s29 = ssub.s32 %s21, %s28
      %p30 = scmp.eq.s32.totalorder %s29, 0
      %s32 = sadd.s32 %s31, 1
      %s33 = scalar_select %p30, %s31, %s32
      %p36 = pneg %p30
      %p37 = scmp.eq.s32.totalorder %s21, 1
      %p38 = por %p36, %p37
      %p39 = scmp.ne.s32.totalorder %s31, %s34
      %p40 = scmp.eq.s32.totalorder %s21, 0
      %p41 = por %p39, %p40
      %p42 = scmp.ne.s32.totalorder %s31, %s34
      %p43 = scmp.eq.s32.totalorder %s26, 1
      %p44 = por %p42, %p43
      %p45 = scmp.ne.s32.totalorder %s34, %s35
      %p46 = scmp.eq.s32.totalorder %s26, 0
      %p47 = por %p45, %p46
      %p48 = scmp.ne.s32.totalorder %s34, %s35
      %p49 = scmp.eq.s32.totalorder %s27, 1
      %p50 = por %p48, %p49
      %p52 = scmp.ne.s32.totalorder %s35, %s51
      %p53 = scmp.eq.s32.totalorder %s27, 0
      %p54 = por %p52, %p53
      %s56 = sadd.s32 %s55, 1
      %p59 = scmp.eq.s32.totalorder %s21, 1
      %p60 = scmp.ne.s32.totalorder %s55, %s57
      %p61 = scmp.eq.s32.totalorder %s21, 0
      %p62 = por %p60, %p61
      %p63 = scmp.ne.s32.totalorder %s55, %s57
      %p64 = scmp.eq.s32.totalorder %s26, 1
      %p65 = por %p63, %p64
      %p66 = scmp.ne.s32.totalorder %s57, %s58
      %p67 = scmp.eq.s32.totalorder %s26, 0
      %p68 = por %p66, %p67
      %p69 = scmp.ne.s32.totalorder %s57, %s58
      %p70 = scmp.eq.s32.totalorder %s27, 1
      %p71 = por %p69, %p70
      %p73 = scmp.ne.s32.totalorder %s58, %s72
      %p74 = scmp.eq.s32.totalorder %s27, 0
      %p75 = por %p73, %p74
      %s77 = sadd.s32 %s76, 1
      %p80 = scmp.eq.s32.totalorder %s21, 1
      %p81 = scmp.ne.s32.totalorder %s76, %s78
      %p82 = scmp.eq.s32.totalorder %s21, 0
      %p83 = por %p81, %p82
      %p84 = scmp.ne.s32.totalorder %s76, %s78
      %p85 = scmp.eq.s32.totalorder %s26, 1
      %p86 = por %p84, %p85
      %p87 = scmp.ne.s32.totalorder %s78, %s79
      %p88 = scmp.eq.s32.totalorder %s26, 0
      %p89 = por %p87, %p88
      %p90 = scmp.ne.s32.totalorder %s78, %s79
      %p91 = scmp.eq.s32.totalorder %s27, 1
      %p92 = por %p90, %p91
      %p94 = scmp.ne.s32.totalorder %s79, %s93
      %p95 = scmp.eq.s32.totalorder %s27, 0
      %p96 = por %p94, %p95
      %s98 = sadd.s32 %s97, 1
      %p101 = scmp.eq.s32.totalorder %s21, 1
      %p102 = scmp.ne.s32.totalorder %s97, %s99
      %p103 = scmp.eq.s32.totalorder %s21, 0
      %p104 = por %p102, %p103
      %p105 = scmp.ne.s32.totalorder %s97, %s99
      %p106 = scmp.eq.s32.totalorder %s26, 1
      %p107 = por %p105, %p106
      %p108 = scmp.ne.s32.totalorder %s99, %s100
      %p109 = scmp.eq.s32.totalorder %s26, 0
      %p110 = por %p108, %p109
      %p111 = scmp.ne.s32.totalorder %s99, %s100
      %p112 = scmp.eq.s32.totalorder %s27, 1
      %p113 = por %p111, %p112
      %p115 = scmp.ne.s32.totalorder %s100, %s114
      %p116 = scmp.eq.s32.totalorder %s27, 0
      %p117 = por %p115, %p116
      %s119 = sadd.s32 %s118, 1
      %p122 = scmp.eq.s32.totalorder %s21, 1
      %p123 = scmp.ne.s32.totalorder %s118, %s120
      %p124 = scmp.eq.s32.totalorder %s21, 0
      %p125 = por %p123, %p124
      %p126 = scmp.ne.s32.totalorder %s118, %s120
      %p127 = scmp.eq.s32.totalorder %s26, 1
      %p128 = por %p126, %p127
      %p129 = scmp.ne.s32.totalorder %s120, %s121
      %p130 = scmp.eq.s32.totalorder %s26, 0
      %p131 = por %p129, %p130
      %p132 = scmp.ne.s32.totalorder %s120, %s121
      %p133 = scmp.eq.s32.totalorder %s27, 1
      %p134 = por %p132, %p133
      %p136 = scmp.ne.s32.totalorder %s121, %s135
      %p137 = scmp.eq.s32.totalorder %s27, 0
      %p138 = por %p136, %p137
      %s140 = sadd.s32 %s139, 1
      %p143 = scmp.eq.s32.totalorder %s21, 1
      %p144 = scmp.ne.s32.totalorder %s139, %s141
      %p145 = scmp.eq.s32.totalorder %s21, 0
      %p146 = por %p144, %p145
      %p147 = scmp.ne.s32.totalorder %s139, %s141
      %p148 = scmp.eq.s32.totalorder %s26, 1
      %p149 = por %p147, %p148
      %p150 = scmp.ne.s32.totalorder %s141, %s142
      %p151 = scmp.eq.s32.totalorder %s26, 0
      %p152 = por %p150, %p151
      %p153 = scmp.ne.s32.totalorder %s141, %s142
      %p154 = scmp.eq.s32.totalorder %s27, 1
      %p155 = por %p153, %p154
      %p157 = scmp.ne.s32.totalorder %s142, %s156
      %p158 = scmp.eq.s32.totalorder %s27, 0
      %p159 = por %p157, %p158
      %s161 = sadd.s32 %s160, 1
      %p164 = scmp.eq.s32.totalorder %s21, 1
      %p165 = scmp.ne.s32.totalorder %s160, %s162
      %p166 = scmp.eq.s32.totalorder %s21, 0
      %p167 = por %p165, %p166
      %p168 = scmp.ne.s32.totalorder %s160, %s162
      %p169 = scmp.eq.s32.totalorder %s26, 1
      %p170 = por %p168, %p169
      %p171 = scmp.ne.s32.totalorder %s162, %s163
      %p172 = scmp.eq.s32.totalorder %s26, 0
      %p173 = por %p171, %p172
      %p174 = scmp.ne.s32.totalorder %s162, %s163
      %p175 = scmp.eq.s32.totalorder %s27, 1
      %p176 = por %p174, %p175
      %p178 = scmp.ne.s32.totalorder %s163, %s177
      %p179 = scmp.eq.s32.totalorder %s27, 0
      %p180 = por %p178, %p179
      %s182 = sadd.s32 %s181, 1
      %p185 = scmp.eq.s32.totalorder %s21, 1
      %p186 = scmp.ne.s32.totalorder %s181, %s183
      %p187 = scmp.eq.s32.totalorder %s21, 0
      %p188 = por %p186, %p187
      %p189 = scmp.ne.s32.totalorder %s181, %s183
      %p190 = scmp.eq.s32.totalorder %s26, 1
      %p191 = por %p189, %p190
      %p192 = scmp.ne.s32.totalorder %s183, %s184
      %p193 = scmp.eq.s32.totalorder %s26, 0
      %p194 = por %p192, %p193
      %p195 = scmp.ne.s32.totalorder %s183, %s184
      %p196 = scmp.eq.s32.totalorder %s27, 1
      %p197 = por %p195, %p196
      %p199 = scmp.ne.s32.totalorder %s184, %s198
      %p200 = scmp.eq.s32.totalorder %s27, 0
      %p201 = por %p199, %p200
      %s203 = sadd.s32 %s202, 1
      %p206 = scmp.eq.s32.totalorder %s21, 1
      %p207 = scmp.ne.s32.totalorder %s202, %s204
      %p208 = scmp.eq.s32.totalorder %s21, 0
      %p209 = por %p207, %p208
      %p210 = scmp.ne.s32.totalorder %s202, %s204
      %p211 = scmp.eq.s32.totalorder %s26, 1
      %p212 = por %p210, %p211
      %p213 = scmp.ne.s32.totalorder %s204, %s205
      %p214 = scmp.eq.s32.totalorder %s26, 0
      %p215 = por %p213, %p214
      %p216 = scmp.ne.s32.totalorder %s204, %s205
      %p217 = scmp.eq.s32.totalorder %s27, 1
      %p218 = por %p216, %p217
      %p220 = scmp.ne.s32.totalorder %s205, %s219
      %p221 = scmp.eq.s32.totalorder %s27, 0
      %p222 = por %p220, %p221
      %s224 = sadd.s32 %s223, 1
      %p227 = scmp.eq.s32.totalorder %s21, 1
      %p228 = scmp.ne.s32.totalorder %s223, %s225
      %p229 = scmp.eq.s32.totalorder %s21, 0
      %p230 = por %p228, %p229
      %p231 = scmp.ne.s32.totalorder %s223, %s225
      %p232 = scmp.eq.s32.totalorder %s26, 1
      %p233 = por %p231, %p232
      %p234 = scmp.ne.s32.totalorder %s225, %s226
      %p235 = scmp.eq.s32.totalorder %s26, 0
      %p236 = por %p234, %p235
      %p237 = scmp.ne.s32.totalorder %s225, %s226
      %p238 = scmp.eq.s32.totalorder %s27, 1
      %p239 = por %p237, %p238
      %p241 = scmp.ne.s32.totalorder %s226, %s240
      %p242 = scmp.eq.s32.totalorder %s27, 0
      %p243 = por %p241, %p242
      %s245 = sadd.s32 %s244, 1
      %p248 = scmp.eq.s32.totalorder %s21, 1
      %p249 = scmp.ne.s32.totalorder %s244, %s246
      %p250 = scmp.eq.s32.totalorder %s21, 0
      %p251 = por %p249, %p250
      %p252 = scmp.ne.s32.totalorder %s244, %s246
      %p253 = scmp.eq.s32.totalorder %s26, 1
      %p254 = por %p252, %p253
      %p255 = scmp.ne.s32.totalorder %s246, %s247
      %p256 = scmp.eq.s32.totalorder %s26, 0
      %p257 = por %p255, %p256
      %p258 = scmp.ne.s32.totalorder %s246, %s247
      %p259 = scmp.eq.s32.totalorder %s27, 1
      %p260 = por %p258, %p259
      %p262 = scmp.ne.s32.totalorder %s247, %s261
      %p263 = scmp.eq.s32.totalorder %s27, 0
      %p264 = por %p262, %p263
      %s265 = ssub.s32 %s21, %s28
      %p266 = scmp.eq.s32.totalorder %s265, 0
      %s268 = sadd.s32 %s267, 1
      %s269 = scalar_select %p266, %s267, %s268
      %p272 = pneg %p266
      %p273 = scmp.eq.s32.totalorder %s21, 1
      %p274 = por %p272, %p273
      %p275 = scmp.ne.s32.totalorder %s267, %s270
      %p276 = scmp.eq.s32.totalorder %s21, 0
      %p277 = por %p275, %p276
      %p278 = scmp.ne.s32.totalorder %s267, %s270
      %p279 = scmp.eq.s32.totalorder %s26, 1
      %p280 = por %p278, %p279
      %p281 = scmp.ne.s32.totalorder %s270, %s271
      %p282 = scmp.eq.s32.totalorder %s26, 0
      %p283 = por %p281, %p282
      %p284 = scmp.ne.s32.totalorder %s270, %s271
      %p285 = scmp.eq.s32.totalorder %s27, 1
      %p286 = por %p284, %p285
      %p288 = scmp.ne.s32.totalorder %s271, %s287
      %p289 = scmp.eq.s32.totalorder %s27, 0
      %p290 = por %p288, %p289
      %p291 = scmp.le.s32.totalorder 1, %s21
      %p292 = scmp.lt.s32.totalorder %s21, 3
      %p293 = pnand %p291, %p292
      %p294 = pneg %p293
      // Predicated region
      $region9: #{critic_forward.1} parent=5 // pred_check
        _
      $region10: #{critic_forward.1} parent=5 // pred_check_branch
        %296 = sbr.rel (%p293) target = $region12
      $region11: #{critic_forward.1} parent=5 // pred_region
        %s297 = ssub.s32 %s21, 1
        // Predicated region
        $region13: #{critic_forward.1} parent=11 // pred_check
          %p298 = pneg %p68
        $region14: #{critic_forward.1} parent=11 // pred_check_branch
          %300 = sbr.rel (%p298) target = $region16
        $region15: #{critic_forward.1} parent=11 // pred_region
          _
        $region16: #{critic_forward.1} parent=11 // pred_fallthru
          _
        // Predicated region
        $region17: #{critic_forward.1} parent=11 // pred_check
          %p301 = pneg %p89
        $region18: #{critic_forward.1} parent=11 // pred_check_branch
          %303 = sbr.rel (%p301) target = $region20
        $region19: #{critic_forward.1} parent=11 // pred_region
          _
        $region20: #{critic_forward.1} parent=11 // pred_fallthru
          _
        // Predicated region
        $region21: #{critic_forward.1} parent=11 // pred_check
          %p304 = pneg %p110
        $region22: #{critic_forward.1} parent=11 // pred_check_branch
          %306 = sbr.rel (%p304) target = $region24
        $region23: #{critic_forward.1} parent=11 // pred_region
          _
        $region24: #{critic_forward.1} parent=11 // pred_fallthru
          _
        // Predicated region
        $region25: #{critic_forward.1} parent=11 // pred_check
          %p307 = pneg %p131
        $region26: #{critic_forward.1} parent=11 // pred_check_branch
          %309 = sbr.rel (%p307) target = $region28
        $region27: #{critic_forward.1} parent=11 // pred_region
          _
        $region28: #{critic_forward.1} parent=11 // pred_fallthru
          _
        // Predicated region
        $region29: #{critic_forward.1} parent=11 // pred_check
          %p310 = pneg %p152
        $region30: #{critic_forward.1} parent=11 // pred_check_branch
          %312 = sbr.rel (%p310) target = $region32
        $region31: #{critic_forward.1} parent=11 // pred_region
          _
        $region32: #{critic_forward.1} parent=11 // pred_fallthru
          _
        // Predicated region
        $region33: #{critic_forward.1} parent=11 // pred_check
          %p313 = pneg %p173
        $region34: #{critic_forward.1} parent=11 // pred_check_branch
          %315 = sbr.rel (%p313) target = $region36
        $region35: #{critic_forward.1} parent=11 // pred_region
          _
        $region36: #{critic_forward.1} parent=11 // pred_fallthru
          _
        // Predicated region
        $region37: #{critic_forward.1} parent=11 // pred_check
          %p316 = pneg %p194
        $region38: #{critic_forward.1} parent=11 // pred_check_branch
          %318 = sbr.rel (%p316) target = $region40
        $region39: #{critic_forward.1} parent=11 // pred_region
          _
        $region40: #{critic_forward.1} parent=11 // pred_fallthru
          _
        // Predicated region
        $region41: #{critic_forward.1} parent=11 // pred_check
          %p319 = pneg %p215
        $region42: #{critic_forward.1} parent=11 // pred_check_branch
          %321 = sbr.rel (%p319) target = $region44
        $region43: #{critic_forward.1} parent=11 // pred_region
          _
        $region44: #{critic_forward.1} parent=11 // pred_fallthru
          _
        // Predicated region
        $region45: #{critic_forward.1} parent=11 // pred_check
          %p322 = pneg %p236
        $region46: #{critic_forward.1} parent=11 // pred_check_branch
          %324 = sbr.rel (%p322) target = $region48
        $region47: #{critic_forward.1} parent=11 // pred_region
          _
        $region48: #{critic_forward.1} parent=11 // pred_fallthru
          _
        // Predicated region
        $region49: #{critic_forward.1} parent=11 // pred_check
          %p325 = pneg %p257
        $region50: #{critic_forward.1} parent=11 // pred_check_branch
          %327 = sbr.rel (%p325) target = $region52
        $region51: #{critic_forward.1} parent=11 // pred_region
          _
        $region52: #{critic_forward.1} parent=11 // pred_fallthru
          _
      $region12: #{critic_forward.1} parent=5 // pred_fallthru
        _
      %p328 = scmp.lt.s32.totalorder %s21, 2
      // Predicated region
      $region53: #{critic_forward.1} parent=5 // pred_check
        %p329 = pneg %p328
      $region54: #{critic_forward.1} parent=5 // pred_check_branch
        %331 = sbr.rel (%p329) target = $region56
      $region55: #{critic_forward.1} parent=5 // pred_region
        // Predicated region
        $region57: #{critic_forward.1} parent=55 // pred_check
          %p332 = pneg %p41
        $region58: #{critic_forward.1} parent=55 // pred_check_branch
          %334 = sbr.rel (%p332) target = $region60
        $region59: #{critic_forward.1} parent=55 // pred_region
          %s335 = sand.u32 %s31, 1
          %s336 = sand.u32 %s31, 1
          %s337 = smul.addr %s336, 24
          %s338 = scalar_lea.vmem [#allocation4], %s337
          %s339 = smul.addr %s21, 8
          %s340 = scalar_lea.vmem %s0, %s339
          // Predicated region
          $region61: #{critic_forward.1} parent=59 // pred_check
            _
          $region62: #{critic_forward.1} parent=59 // pred_check_branch
            %342 = sbr.rel (0) target = $region64
          $region63: #{critic_forward.1} parent=59 // pred_region
            // Predicated region
            $region65: #{critic_forward.1} parent=63 // pred_check
              _
            $region66: #{critic_forward.1} parent=63 // pred_check_branch
              %344 = sbr.rel (0) target = $region68
            $region67: #{critic_forward.1} parent=63 // pred_region
              // Predicated region
              $region80: #{critic_forward.1} parent=67 // pred_check
                _
              $region81: #{critic_forward.1} parent=67 // pred_check_branch
                %363 = sbr.rel (0) target = $region83
              $region82: #{critic_forward.1} parent=67 // pred_region
                loop: start=0, step=1, limit=1
                $region84: #{critic_forward.1} parent=82 // loop_pre_header
                  _
                $region85: #{critic_forward.1} parent=82 // loop_header
                  %s365 = sphi 0, %s369
                  %p366 = scmp.ge.s32.totalorder %s365, 1
                  %s370 = sphi %s340, %s340
                  %s371 = sphi %s338, %s338
                $region86: #{critic_forward.1} parent=82 // loop_header_branch
                  %368 = sbr.rel (%p366) target = $region90
                $region87: #{critic_forward.1} parent=82 // loop_body
                  %v372 = vld [vmem:[%s370] sm:$0xff]
                  %373 = vst [vmem:[%s371] sm:$0xff] %v372
                  %v374 = vld [vmem:[%s370 + $0x10] sm:$0xff]
                  %375 = vst [vmem:[%s371 + $0x8] sm:$0xff] %v374
                  %v376 = vld [vmem:[%s370 + $0x20] sm:$0xff]
                  %377 = vst [vmem:[%s371 + $0x10] sm:$0xff] %v376
                $region88: #{critic_forward.1} parent=82 // loop_footer
                  %s369 = sadd.s32 1, %s365
                $region89: #{critic_forward.1} parent=82 // loop_footer_branch
                  %364 = sbr.rel target = $region85
                $region90: #{critic_forward.1} parent=82 // loop_exit
                  _
              $region83: #{critic_forward.1} parent=67 // pred_fallthru
                _
              // Predicated region
              $region91: #{critic_forward.1} parent=67 // pred_check
                _
              $region92: #{critic_forward.1} parent=67 // pred_check_branch
                %379 = sbr.rel target = $region94
              $region93: #{critic_forward.1} parent=67 // pred_region
                _
              $region94: #{critic_forward.1} parent=67 // pred_fallthru
                _
            $region68: #{critic_forward.1} parent=63 // pred_fallthru
              _
            // Predicated region
            $region69: #{critic_forward.1} parent=63 // pred_check
              _
            $region70: #{critic_forward.1} parent=63 // pred_check_branch
              %346 = sbr.rel target = $region72
            $region71: #{critic_forward.1} parent=63 // pred_region
              loop: start=0, step=1, limit=1
              $region73: #{critic_forward.1} parent=71 // loop_pre_header
                _
              $region74: #{critic_forward.1} parent=71 // loop_header
                %s349 = sphi 0, %s353
                %p350 = scmp.ge.s32.totalorder %s349, 1
                %s354 = sphi %s340, %s340
                %s355 = sphi %s338, %s338
              $region75: #{critic_forward.1} parent=71 // loop_header_branch
                %352 = sbr.rel (%p350) target = $region79
              $region76: #{critic_forward.1} parent=71 // loop_body
                %v356 = vld [vmem:[%s354] sm:$0xff]
                %357 = vst [vmem:[%s355] sm:$0xff] %v356
                %v358 = vld [vmem:[%s354 + $0x10] sm:$0xff]
                %359 = vst [vmem:[%s355 + $0x8] sm:$0xff] %v358
                %v360 = vld [vmem:[%s354 + $0x20] sm:$0xff]
                %361 = vst [vmem:[%s355 + $0x10] sm:$0xff] %v360
              $region77: #{critic_forward.1} parent=71 // loop_footer
                %s353 = sadd.s32 1, %s349
              $region78: #{critic_forward.1} parent=71 // loop_footer_branch
                %348 = sbr.rel target = $region74
              $region79: #{critic_forward.1} parent=71 // loop_exit
                _
            $region72: #{critic_forward.1} parent=63 // pred_fallthru
              _
          $region64: #{critic_forward.1} parent=59 // pred_fallthru
            _
          %380 = vnop
        $region60: #{critic_forward.1} parent=55 // pred_fallthru
          _
      $region56: #{critic_forward.1} parent=5 // pred_fallthru
        _
      %p381 = scmp.le.s32.totalorder 1, %s21
      %p382 = scmp.lt.s32.totalorder %s21, 3
      %p383 = pnand %p381, %p382
      %p384 = pneg %p383
      // Predicated region
      $region95: #{critic_forward.1} parent=5 // pred_check
        _
      $region96: #{critic_forward.1} parent=5 // pred_check_branch
        %386 = sbr.rel (%p383) target = $region98
      $region97: #{critic_forward.1} parent=5 // pred_region
        %s387 = ssub.s32 %s21, 1
        %s388 = sand.u32 %s34, 1
        %s389 = sand.u32 %s34, 1
        %s390 = smul.addr %s389, 24
        %s391 = scalar_lea.vmem [#allocation4], %s390
        // Predicated region
        $region99: #{critic_forward.1} parent=97 // pred_check
          %p392 = pneg %p47
        $region100: #{critic_forward.1} parent=97 // pred_check_branch
          %394 = sbr.rel (%p392) target = $region102
        $region101: #{critic_forward.1} parent=97 // pred_region
          _
        $region102: #{critic_forward.1} parent=97 // pred_fallthru
          _
        %s395 = sand.u32 %s34, 1
        %s396 = sand.u32 %s34, 1
        %s397 = smul.addr %s396, 24
        %s398 = scalar_lea.vmem [#allocation4], %s397
        %p399 = pneg %p47
        %p400 = pneg %p44
        %p401 = pneg %p68
        %p402 = pneg %p65
        %p403 = pneg %p89
        %p404 = pneg %p86
        %p405 = pneg %p110
        %p406 = pneg %p107
        %p407 = pneg %p131
        %p408 = pneg %p128
        %p409 = pneg %p152
        %p410 = pneg %p149
        %p411 = pneg %p173
        %p412 = pneg %p170
        %p413 = pneg %p194
        %p414 = pneg %p191
        %p415 = pneg %p215
        %p416 = pneg %p212
        %p417 = pneg %p236
        %p418 = pneg %p233
        %p419 = pneg %p257
        %p420 = pneg %p254
        %p421 = pneg %p283
        %p422 = pneg %p280
        %p423 = scmp.lt.s32.totalorder %s26, 1
        %s424 = scalar_select %p423, %s26, 1
        %s425 = smul.addr %s424, 2
        %s426 = scalar_lea.vmem %s11, %s425
        %p427 = scmp.lt.s32.totalorder %s26, 1
        %s428 = scalar_select %p427, %s26, 1
        %s429 = smul.addr %s428, 2
        %s430 = scalar_lea.vmem %s11, %s429
        %v432 = vld [vmem:[%s391] sm:$0xff]
        %v433 = vld [vmem:[%s391 + $0x8] sm:$0xff]
        %v434 = vld [vmem:[%s391 + $0x10] sm:$0x7f]
        %v435 = vpack.c.bf16 %v433, %v432
        %v436 = vpack.c.bf16 %v434, %v434
        %v437 = vld [vmem:[%s1] sm:$0xf]
        %v438 = vld [vmem:[%s1 + $0x4] sm:$0xf]
        %v439 = vld [vmem:[%s1 + $0x8] sm:$0xf]
        %v440 = vld [vmem:[%s1 + $0xc] sm:$0xf]
        %v441 = vld [vmem:[%s1 + $0x10] sm:$0xf]
        %v442 = vld [vmem:[%s1 + $0x14] sm:$0xf]
        %v443 = vld [vmem:[%s1 + $0x18] sm:$0xf]
        %v444 = vld [vmem:[%s1 + $0x1c] sm:$0xf]
        %v445 = vld [vmem:[%s1 + $0x20] sm:$0xf]
        %v446 = vld [vmem:[%s1 + $0x24] sm:$0xf]
        %v447 = vld [vmem:[%s1 + $0x28] sm:$0xf]
        %v448 = vld [vmem:[%s1 + $0x2c] sm:$0xf]
        %v449 = vld [vmem:[%s1 + $0x30] sm:$0xf]
        %v450 = vld [vmem:[%s1 + $0x34] sm:$0xf]
        %v451 = vld [vmem:[%s1 + $0x38] sm:$0xf]
        %v452 = vld [vmem:[%s1 + $0x3c] sm:$0xf]
        %v453 = vld [vmem:[%s1 + $0x40] sm:$0xf]
        %v454 = vld [vmem:[%s1 + $0x44] sm:$0xf]
        %v455 = vld [vmem:[%s1 + $0x48] sm:$0xf]
        %v456 = vld [vmem:[%s1 + $0x4c] sm:$0xf]
        %v457 = vld [vmem:[%s1 + $0x50] sm:$0xf]
        %v458 = vld [vmem:[%s1 + $0x54] sm:$0xf]
        %v459 = vld [vmem:[%s1 + $0x58] sm:$0xf]
        %v460 = vld [vmem:[%s1 + $0x5c] sm:$0xf]
        %v461 = vld [vmem:[%s1 + $0x60] sm:$0xf]
        %v462 = vld [vmem:[%s1 + $0x64] sm:$0xf]
        %v463 = vld [vmem:[%s1 + $0x68] sm:$0xf]
        %v464 = vld [vmem:[%s1 + $0x6c] sm:$0xf]
        %v465 = vld [vmem:[%s1 + $0x70] sm:$0xf]
        %v466 = vld [vmem:[%s1 + $0x74] sm:$0xf]
        %v467 = vld [vmem:[%s1 + $0x78] sm:$0xf]
        %v468 = vld [vmem:[%s1 + $0x7c] sm:$0xf]
        %v469 = vld [vmem:[%s1 + $0x80] sm:$0xf]
        %v470 = vld [vmem:[%s1 + $0x84] sm:$0xf]
        %v471 = vld [vmem:[%s1 + $0x88] sm:$0xf]
        %v472 = vld [vmem:[%s1 + $0x8c] sm:$0xf]
        %v473 = vld [vmem:[%s1 + $0x90] sm:$0xf]
        %v474 = vld [vmem:[%s1 + $0x94] sm:$0xf]
        %v475 = vld [vmem:[%s1 + $0x98] sm:$0xf]
        %v476 = vld [vmem:[%s1 + $0x9c] sm:$0xf]
        %v477 = vld [vmem:[%s1 + $0xa0] sm:$0xf]
        %v478 = vld [vmem:[%s1 + $0xa4] sm:$0xf]
        %v479 = vld [vmem:[%s1 + $0xa8] sm:$0xf]
        %v480 = vld [vmem:[%s1 + $0xac] sm:$0xf]
        %v481 = vld [vmem:[%s1 + $0xb0] sm:$0xf]
        %v482 = vld [vmem:[%s1 + $0xb4] sm:$0xf]
        %v483 = vld [vmem:[%s1 + $0xb8] sm:$0xf]
        %v484 = vld [vmem:[%s1 + $0xbc] sm:$0xf]
        %v485 = vld [vmem:[%s1 + $0xc0] sm:$0xf]
        %v486 = vld [vmem:[%s1 + $0xc4] sm:$0xf]
        %v487 = vld [vmem:[%s1 + $0xc8] sm:$0xf]
        %v488 = vld [vmem:[%s1 + $0xcc] sm:$0xf]
        %v489 = vld [vmem:[%s1 + $0xd0] sm:$0xf]
        %v490 = vld [vmem:[%s1 + $0xd4] sm:$0xf]
        %v491 = vld [vmem:[%s1 + $0xd8] sm:$0xf]
        %v492 = vld [vmem:[%s1 + $0xdc] sm:$0xf]
        %v493 = vld [vmem:[%s1 + $0xe0] sm:$0xf]
        %v494 = vld [vmem:[%s1 + $0xe4] sm:$0xf]
        %v495 = vld [vmem:[%s1 + $0xe8] sm:$0xf]
        %v496 = vld [vmem:[%s1 + $0xec] sm:$0xf]
        %v497 = vld [vmem:[%s1 + $0xf0] sm:$0xf]
        %v498 = vld [vmem:[%s1 + $0xf4] sm:$0xf]
        %v499 = vld [vmem:[%s1 + $0xf8] sm:$0xf]
        %v500 = vld [vmem:[%s1 + $0xfc] sm:$0xf]
        %v501 = vld [vmem:[%s2] sm:$0xff]
        %v502 = vld [vmem:[%s2 + $0x8] sm:$0xff]
        %v503 = vld [vmem:[%s2 + $0x10] sm:$0xff]
        %v504 = vld [vmem:[%s2 + $0x18] sm:$0xff]
        %v505 = vld [vmem:[%s2 + $0x20] sm:$0xff]
        %v506 = vld [vmem:[%s2 + $0x28] sm:$0xff]
        %v507 = vld [vmem:[%s2 + $0x30] sm:$0xff]
        %v508 = vld [vmem:[%s2 + $0x38] sm:$0xff]
        %v509 = vld [vmem:[%s2 + $0x40] sm:$0xff]
        %v510 = vld [vmem:[%s2 + $0x48] sm:$0xff]
        %v511 = vld [vmem:[%s2 + $0x50] sm:$0xff]
        %v512 = vld [vmem:[%s2 + $0x58] sm:$0xff]
        %v513 = vld [vmem:[%s2 + $0x60] sm:$0xff]
        %v514 = vld [vmem:[%s2 + $0x68] sm:$0xff]
        %v515 = vld [vmem:[%s2 + $0x70] sm:$0xff]
        %v516 = vld [vmem:[%s2 + $0x78] sm:$0xff]
        %v517 = vld [vmem:[%s2 + $0x80] sm:$0xff]
        %v518 = vld [vmem:[%s2 + $0x88] sm:$0xff]
        %v519 = vld [vmem:[%s2 + $0x90] sm:$0xff]
        %v520 = vld [vmem:[%s2 + $0x98] sm:$0xff]
        %v521 = vld [vmem:[%s2 + $0xa0] sm:$0xff]
        %v522 = vld [vmem:[%s2 + $0xa8] sm:$0xff]
        %v523 = vld [vmem:[%s2 + $0xb0] sm:$0xff]
        %v524 = vld [vmem:[%s2 + $0xb8] sm:$0xff]
        %v525 = vld [vmem:[%s2 + $0xc0] sm:$0xff]
        %v526 = vld [vmem:[%s2 + $0xc8] sm:$0xff]
        %v527 = vld [vmem:[%s2 + $0xd0] sm:$0xff]
        %v528 = vld [vmem:[%s2 + $0xd8] sm:$0xff]
        %v529 = vld [vmem:[%s2 + $0xe0] sm:$0xff]
        %v530 = vld [vmem:[%s2 + $0xe8] sm:$0xff]
        %v531 = vld [vmem:[%s2 + $0xf0] sm:$0xff]
        %v532 = vld [vmem:[%s2 + $0xf8] sm:$0xff]
        %v533 = vld [vmem:[%s2 + $0x100] sm:$0xff]
        %v534 = vld [vmem:[%s2 + $0x108] sm:$0xff]
        %v535 = vld [vmem:[%s2 + $0x110] sm:$0xff]
        %v536 = vld [vmem:[%s2 + $0x118] sm:$0xff]
        %v537 = vld [vmem:[%s2 + $0x120] sm:$0xff]
        %v538 = vld [vmem:[%s2 + $0x128] sm:$0xff]
        %v539 = vld [vmem:[%s2 + $0x130] sm:$0xff]
        %v540 = vld [vmem:[%s2 + $0x138] sm:$0xff]
        %v541 = vld [vmem:[%s2 + $0x140] sm:$0xff]
        %v542 = vld [vmem:[%s2 + $0x148] sm:$0xff]
        %v543 = vld [vmem:[%s2 + $0x150] sm:$0xff]
        %v544 = vld [vmem:[%s2 + $0x158] sm:$0xff]
        %v545 = vld [vmem:[%s2 + $0x160] sm:$0xff]
        %v546 = vld [vmem:[%s2 + $0x168] sm:$0xff]
        %v547 = vld [vmem:[%s2 + $0x170] sm:$0xff]
        %v548 = vld [vmem:[%s2 + $0x178] sm:$0xff]
        %v549 = vld [vmem:[%s2 + $0x180] sm:$0xff]
        %v550 = vld [vmem:[%s2 + $0x188] sm:$0xff]
        %v551 = vld [vmem:[%s2 + $0x190] sm:$0xff]
        %v552 = vld [vmem:[%s2 + $0x198] sm:$0xff]
        %v553 = vld [vmem:[%s2 + $0x1a0] sm:$0xff]
        %v554 = vld [vmem:[%s2 + $0x1a8] sm:$0xff]
        %v555 = vld [vmem:[%s2 + $0x1b0] sm:$0xff]
        %v556 = vld [vmem:[%s2 + $0x1b8] sm:$0xff]
        %v557 = vld [vmem:[%s2 + $0x1c0] sm:$0xff]
        %v558 = vld [vmem:[%s2 + $0x1c8] sm:$0xff]
        %v559 = vld [vmem:[%s2 + $0x1d0] sm:$0xff]
        %v560 = vld [vmem:[%s2 + $0x1d8] sm:$0xff]
        %v561 = vld [vmem:[%s2 + $0x1e0] sm:$0xff]
        %v562 = vld [vmem:[%s2 + $0x1e8] sm:$0xff]
        %v563 = vld [vmem:[%s2 + $0x1f0] sm:$0xff]
        %v564 = vld [vmem:[%s2 + $0x1f8] sm:$0xff]
        %566 = vset.pattern.permute.xlu0 0
        %567 = vperm.xlu0 %566, %v501
        %v568 = vpop.permute.xlu0 %567
        %571 = vset.pattern.permute.xlu0 0
        %572 = vperm.xlu0 %571, %v502
        %v573 = vpop.permute.xlu0 %572
        %576 = vset.pattern.permute.xlu0 0
        %577 = vperm.xlu0 %576, %v503
        %v578 = vpop.permute.xlu0 %577
        %581 = vset.pattern.permute.xlu0 0
        %582 = vperm.xlu0 %581, %v504
        %v583 = vpop.permute.xlu0 %582
        %586 = vset.pattern.permute.xlu0 0
        %587 = vperm.xlu0 %586, %v505
        %v588 = vpop.permute.xlu0 %587
        %591 = vset.pattern.permute.xlu0 0
        %592 = vperm.xlu0 %591, %v506
        %v593 = vpop.permute.xlu0 %592
        %596 = vset.pattern.permute.xlu0 0
        %597 = vperm.xlu0 %596, %v507
        %v598 = vpop.permute.xlu0 %597
        %601 = vset.pattern.permute.xlu0 0
        %602 = vperm.xlu0 %601, %v508
        %v603 = vpop.permute.xlu0 %602
        %606 = vset.pattern.permute.xlu0 0
        %607 = vperm.xlu0 %606, %v509
        %v608 = vpop.permute.xlu0 %607
        %611 = vset.pattern.permute.xlu0 0
        %612 = vperm.xlu0 %611, %v510
        %v613 = vpop.permute.xlu0 %612
        %616 = vset.pattern.permute.xlu0 0
        %617 = vperm.xlu0 %616, %v511
        %v618 = vpop.permute.xlu0 %617
        %621 = vset.pattern.permute.xlu0 0
        %622 = vperm.xlu0 %621, %v512
        %v623 = vpop.permute.xlu0 %622
        %626 = vset.pattern.permute.xlu0 0
        %627 = vperm.xlu0 %626, %v513
        %v628 = vpop.permute.xlu0 %627
        %631 = vset.pattern.permute.xlu0 0
        %632 = vperm.xlu0 %631, %v514
        %v633 = vpop.permute.xlu0 %632
        %636 = vset.pattern.permute.xlu0 0
        %637 = vperm.xlu0 %636, %v515
        %v638 = vpop.permute.xlu0 %637
        %641 = vset.pattern.permute.xlu0 0
        %642 = vperm.xlu0 %641, %v516
        %v643 = vpop.permute.xlu0 %642
        %646 = vset.pattern.permute.xlu0 0
        %647 = vperm.xlu0 %646, %v517
        %v648 = vpop.permute.xlu0 %647
        %651 = vset.pattern.permute.xlu0 0
        %652 = vperm.xlu0 %651, %v518
        %v653 = vpop.permute.xlu0 %652
        %656 = vset.pattern.permute.xlu0 0
        %657 = vperm.xlu0 %656, %v519
        %v658 = vpop.permute.xlu0 %657
        %661 = vset.pattern.permute.xlu0 0
        %662 = vperm.xlu0 %661, %v520
        %v663 = vpop.permute.xlu0 %662
        %666 = vset.pattern.permute.xlu0 0
        %667 = vperm.xlu0 %666, %v521
        %v668 = vpop.permute.xlu0 %667
        %671 = vset.pattern.permute.xlu0 0
        %672 = vperm.xlu0 %671, %v522
        %v673 = vpop.permute.xlu0 %672
        %676 = vset.pattern.permute.xlu0 0
        %677 = vperm.xlu0 %676, %v523
        %v678 = vpop.permute.xlu0 %677
        %681 = vset.pattern.permute.xlu0 0
        %682 = vperm.xlu0 %681, %v524
        %v683 = vpop.permute.xlu0 %682
        %686 = vset.pattern.permute.xlu0 0
        %687 = vperm.xlu0 %686, %v525
        %v688 = vpop.permute.xlu0 %687
        %691 = vset.pattern.permute.xlu0 0
        %692 = vperm.xlu0 %691, %v526
        %v693 = vpop.permute.xlu0 %692
        %696 = vset.pattern.permute.xlu0 0
        %697 = vperm.xlu0 %696, %v527
        %v698 = vpop.permute.xlu0 %697
        %701 = vset.pattern.permute.xlu0 0
        %702 = vperm.xlu0 %701, %v528
        %v703 = vpop.permute.xlu0 %702
        %706 = vset.pattern.permute.xlu0 0
        %707 = vperm.xlu0 %706, %v529
        %v708 = vpop.permute.xlu0 %707
        %711 = vset.pattern.permute.xlu0 0
        %712 = vperm.xlu0 %711, %v530
        %v713 = vpop.permute.xlu0 %712
        %716 = vset.pattern.permute.xlu0 0
        %717 = vperm.xlu0 %716, %v531
        %v718 = vpop.permute.xlu0 %717
        %721 = vset.pattern.permute.xlu0 0
        %722 = vperm.xlu0 %721, %v532
        %v723 = vpop.permute.xlu0 %722
        %726 = vset.pattern.permute.xlu0 0
        %727 = vperm.xlu0 %726, %v533
        %v728 = vpop.permute.xlu0 %727
        %731 = vset.pattern.permute.xlu0 0
        %732 = vperm.xlu0 %731, %v534
        %v733 = vpop.permute.xlu0 %732
        %736 = vset.pattern.permute.xlu0 0
        %737 = vperm.xlu0 %736, %v535
        %v738 = vpop.permute.xlu0 %737
        %741 = vset.pattern.permute.xlu0 0
        %742 = vperm.xlu0 %741, %v536
        %v743 = vpop.permute.xlu0 %742
        %746 = vset.pattern.permute.xlu0 0
        %747 = vperm.xlu0 %746, %v537
        %v748 = vpop.permute.xlu0 %747
        %751 = vset.pattern.permute.xlu0 0
        %752 = vperm.xlu0 %751, %v538
        %v753 = vpop.permute.xlu0 %752
        %756 = vset.pattern.permute.xlu0 0
        %757 = vperm.xlu0 %756, %v539
        %v758 = vpop.permute.xlu0 %757
        %761 = vset.pattern.permute.xlu0 0
        %762 = vperm.xlu0 %761, %v540
        %v763 = vpop.permute.xlu0 %762
        %766 = vset.pattern.permute.xlu0 0
        %767 = vperm.xlu0 %766, %v541
        %v768 = vpop.permute.xlu0 %767
        %771 = vset.pattern.permute.xlu0 0
        %772 = vperm.xlu0 %771, %v542
        %v773 = vpop.permute.xlu0 %772
        %776 = vset.pattern.permute.xlu0 0
        %777 = vperm.xlu0 %776, %v543
        %v778 = vpop.permute.xlu0 %777
        %781 = vset.pattern.permute.xlu0 0
        %782 = vperm.xlu0 %781, %v544
        %v783 = vpop.permute.xlu0 %782
        %786 = vset.pattern.permute.xlu0 0
        %787 = vperm.xlu0 %786, %v545
        %v788 = vpop.permute.xlu0 %787
        %791 = vset.pattern.permute.xlu0 0
        %792 = vperm.xlu0 %791, %v546
        %v793 = vpop.permute.xlu0 %792
        %796 = vset.pattern.permute.xlu0 0
        %797 = vperm.xlu0 %796, %v547
        %v798 = vpop.permute.xlu0 %797
        %801 = vset.pattern.permute.xlu0 0
        %802 = vperm.xlu0 %801, %v548
        %v803 = vpop.permute.xlu0 %802
        %806 = vset.pattern.permute.xlu0 0
        %807 = vperm.xlu0 %806, %v549
        %v808 = vpop.permute.xlu0 %807
        %811 = vset.pattern.permute.xlu0 0
        %812 = vperm.xlu0 %811, %v550
        %v813 = vpop.permute.xlu0 %812
        %816 = vset.pattern.permute.xlu0 0
        %817 = vperm.xlu0 %816, %v551
        %v818 = vpop.permute.xlu0 %817
        %821 = vset.pattern.permute.xlu0 0
        %822 = vperm.xlu0 %821, %v552
        %v823 = vpop.permute.xlu0 %822
        %826 = vset.pattern.permute.xlu0 0
        %827 = vperm.xlu0 %826, %v553
        %v828 = vpop.permute.xlu0 %827
        %831 = vset.pattern.permute.xlu0 0
        %832 = vperm.xlu0 %831, %v554
        %v833 = vpop.permute.xlu0 %832
        %836 = vset.pattern.permute.xlu0 0
        %837 = vperm.xlu0 %836, %v555
        %v838 = vpop.permute.xlu0 %837
        %841 = vset.pattern.permute.xlu0 0
        %842 = vperm.xlu0 %841, %v556
        %v843 = vpop.permute.xlu0 %842
        %846 = vset.pattern.permute.xlu0 0
        %847 = vperm.xlu0 %846, %v557
        %v848 = vpop.permute.xlu0 %847
        %851 = vset.pattern.permute.xlu0 0
        %852 = vperm.xlu0 %851, %v558
        %v853 = vpop.permute.xlu0 %852
        %856 = vset.pattern.permute.xlu0 0
        %857 = vperm.xlu0 %856, %v559
        %v858 = vpop.permute.xlu0 %857
        %861 = vset.pattern.permute.xlu0 0
        %862 = vperm.xlu0 %861, %v560
        %v863 = vpop.permute.xlu0 %862
        %866 = vset.pattern.permute.xlu0 0
        %867 = vperm.xlu0 %866, %v561
        %v868 = vpop.permute.xlu0 %867
        %871 = vset.pattern.permute.xlu0 0
        %872 = vperm.xlu0 %871, %v562
        %v873 = vpop.permute.xlu0 %872
        %876 = vset.pattern.permute.xlu0 0
        %877 = vperm.xlu0 %876, %v563
        %v878 = vpop.permute.xlu0 %877
        %881 = vset.pattern.permute.xlu0 0
        %882 = vperm.xlu0 %881, %v564
        %v883 = vpop.permute.xlu0 %882
        %v949 = vunpack.c.l.b16 %v437
        %v950 = vunpack.c.l.b16 %v438
        %v951 = vunpack.c.l.b16 %v439
        %v952 = vunpack.c.l.b16 %v440
        %v953 = vunpack.c.l.b16 %v441
        %v954 = vunpack.c.l.b16 %v442
        %v955 = vunpack.c.l.b16 %v443
        %v956 = vunpack.c.l.b16 %v444
        %v957 = vunpack.c.l.b16 %v445
        %v958 = vunpack.c.l.b16 %v446
        %v959 = vunpack.c.l.b16 %v447
        %v960 = vunpack.c.l.b16 %v448
        %v961 = vunpack.c.l.b16 %v449
        %v962 = vunpack.c.l.b16 %v450
        %v963 = vunpack.c.l.b16 %v451
        %v964 = vunpack.c.l.b16 %v452
        %v965 = vunpack.c.l.b16 %v453
        %v966 = vunpack.c.l.b16 %v454
        %v967 = vunpack.c.l.b16 %v455
        %v968 = vunpack.c.l.b16 %v456
        %v969 = vunpack.c.l.b16 %v457
        %v970 = vunpack.c.l.b16 %v458
        %v971 = vunpack.c.l.b16 %v459
        %v972 = vunpack.c.l.b16 %v460
        %v973 = vunpack.c.l.b16 %v461
        %v974 = vunpack.c.l.b16 %v462
        %v975 = vunpack.c.l.b16 %v463
        %v976 = vunpack.c.l.b16 %v464
        %v977 = vunpack.c.l.b16 %v465
        %v978 = vunpack.c.l.b16 %v466
        %v979 = vunpack.c.l.b16 %v467
        %v980 = vunpack.c.l.b16 %v468
        %v981 = vunpack.c.l.b16 %v469
        %v982 = vunpack.c.l.b16 %v470
        %v983 = vunpack.c.l.b16 %v471
        %v984 = vunpack.c.l.b16 %v472
        %v985 = vunpack.c.l.b16 %v473
        %v986 = vunpack.c.l.b16 %v474
        %v987 = vunpack.c.l.b16 %v475
        %v988 = vunpack.c.l.b16 %v476
        %v989 = vunpack.c.l.b16 %v477
        %v990 = vunpack.c.l.b16 %v478
        %v991 = vunpack.c.l.b16 %v479
        %v992 = vunpack.c.l.b16 %v480
        %v993 = vunpack.c.l.b16 %v481
        %v994 = vunpack.c.l.b16 %v482
        %v995 = vunpack.c.l.b16 %v483
        %v996 = vunpack.c.l.b16 %v484
        %v997 = vunpack.c.l.b16 %v485
        %v998 = vunpack.c.l.b16 %v486
        %v999 = vunpack.c.l.b16 %v487
        %v1000 = vunpack.c.l.b16 %v488
        %v1001 = vunpack.c.l.b16 %v489
        %v1002 = vunpack.c.l.b16 %v490
        %v1003 = vunpack.c.l.b16 %v491
        %v1004 = vunpack.c.l.b16 %v492
        %v1005 = vunpack.c.l.b16 %v493
        %v1006 = vunpack.c.l.b16 %v494
        %v1007 = vunpack.c.l.b16 %v495
        %v1008 = vunpack.c.l.b16 %v496
        %v1009 = vunpack.c.l.b16 %v497
        %v1010 = vunpack.c.l.b16 %v498
        %v1011 = vunpack.c.l.b16 %v499
        %v1012 = vunpack.c.l.b16 %v500
        %v1013 = vpack.c.b16 %v950, %v949
        %v1014 = vpack.c.b16 %v952, %v951
        %v1015 = vpack.c.b16 %v954, %v953
        %v1016 = vpack.c.b16 %v956, %v955
        %v1017 = vpack.c.b16 %v958, %v957
        %v1018 = vpack.c.b16 %v960, %v959
        %v1019 = vpack.c.b16 %v962, %v961
        %v1020 = vpack.c.b16 %v964, %v963
        %v1021 = vpack.c.b16 %v966, %v965
        %v1022 = vpack.c.b16 %v968, %v967
        %v1023 = vpack.c.b16 %v970, %v969
        %v1024 = vpack.c.b16 %v972, %v971
        %v1025 = vpack.c.b16 %v974, %v973
        %v1026 = vpack.c.b16 %v976, %v975
        %v1027 = vpack.c.b16 %v978, %v977
        %v1028 = vpack.c.b16 %v980, %v979
        %v1029 = vpack.c.b16 %v982, %v981
        %v1030 = vpack.c.b16 %v984, %v983
        %v1031 = vpack.c.b16 %v986, %v985
        %v1032 = vpack.c.b16 %v988, %v987
        %v1033 = vpack.c.b16 %v990, %v989
        %v1034 = vpack.c.b16 %v992, %v991
        %v1035 = vpack.c.b16 %v994, %v993
        %v1036 = vpack.c.b16 %v996, %v995
        %v1037 = vpack.c.b16 %v998, %v997
        %v1038 = vpack.c.b16 %v1000, %v999
        %v1039 = vpack.c.b16 %v1002, %v1001
        %v1040 = vpack.c.b16 %v1004, %v1003
        %v1041 = vpack.c.b16 %v1006, %v1005
        %v1042 = vpack.c.b16 %v1008, %v1007
        %v1043 = vpack.c.b16 %v1010, %v1009
        %v1044 = vpack.c.b16 %v1012, %v1011
        %vm1045 = vcmask 187392
        %v1047 = vsel %vm1045, %v1013, 0
        %v1050 = vsel %vm1045, %v1014, 0
        %v1053 = vsel %vm1045, %v1015, 0
        %v1056 = vsel %vm1045, %v1016, 0
        %v1059 = vsel %vm1045, %v1017, 0
        %v1062 = vsel %vm1045, %v1018, 0
        %v1065 = vsel %vm1045, %v1019, 0
        %v1068 = vsel %vm1045, %v1020, 0
        %v1071 = vsel %vm1045, %v1021, 0
        %v1074 = vsel %vm1045, %v1022, 0
        %v1077 = vsel %vm1045, %v1023, 0
        %v1080 = vsel %vm1045, %v1024, 0
        %v1083 = vsel %vm1045, %v1025, 0
        %v1086 = vsel %vm1045, %v1026, 0
        %v1089 = vsel %vm1045, %v1027, 0
        %v1092 = vsel %vm1045, %v1028, 0
        %v1095 = vsel %vm1045, %v1029, 0
        %v1098 = vsel %vm1045, %v1030, 0
        %v1101 = vsel %vm1045, %v1031, 0
        %v1104 = vsel %vm1045, %v1032, 0
        %v1107 = vsel %vm1045, %v1033, 0
        %v1110 = vsel %vm1045, %v1034, 0
        %v1113 = vsel %vm1045, %v1035, 0
        %v1116 = vsel %vm1045, %v1036, 0
        %v1119 = vsel %vm1045, %v1037, 0
        %v1122 = vsel %vm1045, %v1038, 0
        %v1125 = vsel %vm1045, %v1039, 0
        %v1128 = vsel %vm1045, %v1040, 0
        %v1131 = vsel %vm1045, %v1041, 0
        %v1134 = vsel %vm1045, %v1042, 0
        %v1137 = vsel %vm1045, %v1043, 0
        %v1140 = vsel %vm1045, %v1044, 0
        %vm1142 = vcmask 1042432
        %vm1143 = vcmask 1043456
        %v1144 = vsel %vm1142, 4294967295, 65535
        %v1145 = vsel %vm1143, %v1144, 0
        %v1147 = vand.u32 %v436, %v1145
        %1149 = vmatprep.subr.bf16.mxu0 0
        %1150 = vmatpush1.bf16.msra.mxu0 %v435
        %1151 = vmatprep.subr.bf16.mxu0 0
        %1152 = vmatpush1.bf16.msra.mxu0 %v1147
        %1153 = vmatprep.subr.bf16.mxu0 0
        %1154 = vmatpush1.bf16.msra.mxu0 0
        %1155 = vmatprep.subr.bf16.mxu0 0
        %1156 = vmatpush1.bf16.msra.mxu0 0
        %1157 = vmatprep.subr.bf16.mxu0 0
        %1158 = vmatpush1.bf16.msra.mxu0 0
        %1159 = vmatprep.subr.bf16.mxu0 0
        %1160 = vmatpush1.bf16.msra.mxu0 0
        %1161 = vmatprep.subr.bf16.mxu0 0
        %1162 = vmatpush1.bf16.msra.mxu0 0
        %1163 = vmatprep.subr.bf16.mxu0 0
        %1164 = vmatpush1.bf16.msra.mxu0 0
        %1165 = vmatprep.subr.bf16.mxu0 0
        %1166 = vmatpush1.bf16.msra.mxu0 0
        %1167 = vmatprep.subr.bf16.mxu0 0
        %1168 = vmatpush1.bf16.msra.mxu0 0
        %1169 = vmatprep.subr.bf16.mxu0 0
        %1170 = vmatpush1.bf16.msra.mxu0 0
        %1171 = vmatprep.subr.bf16.mxu0 0
        %1172 = vmatpush1.bf16.msra.mxu0 0
        %1173 = vmatprep.subr.bf16.mxu0 0
        %1174 = vmatpush1.bf16.msra.mxu0 0
        %1175 = vmatprep.subr.bf16.mxu0 0
        %1176 = vmatpush1.bf16.msra.mxu0 0
        %1177 = vmatprep.subr.bf16.mxu0 0
        %1178 = vmatpush1.bf16.msra.mxu0 0
        %1179 = vmatprep.subr.bf16.mxu0 0
        %1180 = vmatpush1.bf16.msra.mxu0 0
        %1181 = vmatprep.mubr.bf16.mxu0 0
        %1182 = vmatmul.mubr.bf16.gmra.mrb[0].mxu0 %v1047
        %v1183 = vpop.f32.mrb[0].mxu0
        %v1184 = vadd.f32 %v568, %v1183
        %v1185 = vpop.f32.mrb[0].mxu0
        %v1186 = vpop.f32.mrb[0].mxu0
        %v1187 = vadd.f32 %v573, %v1186
        %v1188 = vpop.f32.mrb[0].mxu0
        %1189 = vmatprep.mubr.bf16.mxu0 0
        %1190 = vmatmul.mubr.bf16.gmra.mrb[0].mxu0 %v1050
        %v1191 = vpop.f32.mrb[0].mxu0
        %v1192 = vadd.f32 %v578, %v1191
        %v1193 = vpop.f32.mrb[0].mxu0
        %v1194 = vpop.f32.mrb[0].mxu0
        %v1195 = vadd.f32 %v583, %v1194
        %v1196 = vpop.f32.mrb[0].mxu0
        %1197 = vmatprep.mubr.bf16.mxu0 0
        %1198 = vmatmul.mubr.bf16.gmra.mrb[0].mxu0 %v1053
        %v1199 = vpop.f32.mrb[0].mxu0
        %v1200 = vadd.f32 %v588, %v1199
        %v1201 = vpop.f32.mrb[0].mxu0
        %v1202 = vpop.f32.mrb[0].mxu0
        %v1203 = vadd.f32 %v593, %v1202
        %v1204 = vpop.f32.mrb[0].mxu0
        %1205 = vmatprep.mubr.bf16.mxu0 0
        %1206 = vmatmul.mubr.bf16.gmra.mrb[0].mxu0 %v1056
        %v1207 = vpop.f32.mrb[0].mxu0
        %v1208 = vadd.f32 %v598, %v1207
        %v1209 = vpop.f32.mrb[0].mxu0
        %v1210 = vpop.f32.mrb[0].mxu0
        %v1211 = vadd.f32 %v603, %v1210
        %v1212 = vpop.f32.mrb[0].mxu0
        %1213 = vmatprep.mubr.bf16.mxu0 0
        %1214 = vmatmul.mubr.bf16.gmra.mrb[0].mxu0 %v1059
        %v1215 = vpop.f32.mrb[0].mxu0
        %v1216 = vadd.f32 %v608, %v1215
        %v1217 = vpop.f32.mrb[0].mxu0
        %v1218 = vpop.f32.mrb[0].mxu0
        %v1219 = vadd.f32 %v613, %v1218
        %v1220 = vpop.f32.mrb[0].mxu0
        %1221 = vmatprep.mubr.bf16.mxu0 0
        %1222 = vmatmul.mubr.bf16.gmra.mrb[0].mxu0 %v1062
        %v1223 = vpop.f32.mrb[0].mxu0
        %v1224 = vadd.f32 %v618, %v1223
        %v1225 = vpop.f32.mrb[0].mxu0
        %v1226 = vpop.f32.mrb[0].mxu0
        %v1227 = vadd.f32 %v623, %v1226
        %v1228 = vpop.f32.mrb[0].mxu0
        %1229 = vmatprep.mubr.bf16.mxu0 0
        %1230 = vmatmul.mubr.bf16.gmra.mrb[0].mxu0 %v1065
        %v1231 = vpop.f32.mrb[0].mxu0
        %v1232 = vadd.f32 %v628, %v1231
        %v1233 = vpop.f32.mrb[0].mxu0
        %v1234 = vpop.f32.mrb[0].mxu0
        %v1235 = vadd.f32 %v633, %v1234
        %v1236 = vpop.f32.mrb[0].mxu0
        %1237 = vmatprep.mubr.bf16.mxu0 0
        %1238 = vmatmul.mubr.bf16.gmra.mrb[0].mxu0 %v1068
        %v1239 = vpop.f32.mrb[0].mxu0
        %v1240 = vadd.f32 %v638, %v1239
        %v1241 = vpop.f32.mrb[0].mxu0
        %v1242 = vpop.f32.mrb[0].mxu0
        %v1243 = vadd.f32 %v643, %v1242
        %v1244 = vpop.f32.mrb[0].mxu0
        %1245 = vmatprep.mubr.bf16.mxu0 0
        %1246 = vmatmul.mubr.bf16.gmra.mrb[0].mxu0 %v1071
        %v1247 = vpop.f32.mrb[0].mxu0
        %v1248 = vadd.f32 %v648, %v1247
        %v1249 = vpop.f32.mrb[0].mxu0
        %v1250 = vpop.f32.mrb[0].mxu0
        %v1251 = vadd.f32 %v653, %v1250
        %v1252 = vpop.f32.mrb[0].mxu0
        %1253 = vmatprep.mubr.bf16.mxu0 0
        %1254 = vmatmul.mubr.bf16.gmra.mrb[0].mxu0 %v1074
        %v1255 = vpop.f32.mrb[0].mxu0
        %v1256 = vadd.f32 %v658, %v1255
        %v1257 = vpop.f32.mrb[0].mxu0
        %v1258 = vpop.f32.mrb[0].mxu0
        %v1259 = vadd.f32 %v663, %v1258
        %v1260 = vpop.f32.mrb[0].mxu0
        %1261 = vmatprep.mubr.bf16.mxu0 0
        %1262 = vmatmul.mubr.bf16.gmra.mrb[0].mxu0 %v1077
        %v1263 = vpop.f32.mrb[0].mxu0
        %v1264 = vadd.f32 %v668, %v1263
        %v1265 = vpop.f32.mrb[0].mxu0
        %v1266 = vpop.f32.mrb[0].mxu0
        %v1267 = vadd.f32 %v673, %v1266
        %v1268 = vpop.f32.mrb[0].mxu0
        %1269 = vmatprep.mubr.bf16.mxu0 0
        %1270 = vmatmul.mubr.bf16.gmra.mrb[0].mxu0 %v1080
        %v1271 = vpop.f32.mrb[0].mxu0
        %v1272 = vadd.f32 %v678, %v1271
        %v1273 = vpop.f32.mrb[0].mxu0
        %v1274 = vpop.f32.mrb[0].mxu0
        %v1275 = vadd.f32 %v683, %v1274
        %v1276 = vpop.f32.mrb[0].mxu0
        %1277 = vmatprep.mubr.bf16.mxu0 0
        %1278 = vmatmul.mubr.bf16.gmra.mrb[0].mxu0 %v1083
        %v1279 = vpop.f32.mrb[0].mxu0
        %v1280 = vadd.f32 %v688, %v1279
        %v1281 = vpop.f32.mrb[0].mxu0
        %v1282 = vpop.f32.mrb[0].mxu0
        %v1283 = vadd.f32 %v693, %v1282
        %v1284 = vpop.f32.mrb[0].mxu0
        %1285 = vmatprep.mubr.bf16.mxu0 0
        %1286 = vmatmul.mubr.bf16.gmra.mrb[0].mxu0 %v1086
        %v1287 = vpop.f32.mrb[0].mxu0
        %v1288 = vadd.f32 %v698, %v1287
        %v1289 = vpop.f32.mrb[0].mxu0
        %v1290 = vpop.f32.mrb[0].mxu0
        %v1291 = vadd.f32 %v703, %v1290
        %v1292 = vpop.f32.mrb[0].mxu0
        %1293 = vmatprep.mubr.bf16.mxu0 0
        %1294 = vmatmul.mubr.bf16.gmra.mrb[0].mxu0 %v1089
        %v1295 = vpop.f32.mrb[0].mxu0
        %v1296 = vadd.f32 %v708, %v1295
        %v1297 = vpop.f32.mrb[0].mxu0
        %v1298 = vpop.f32.mrb[0].mxu0
        %v1299 = vadd.f32 %v713, %v1298
        %v1300 = vpop.f32.mrb[0].mxu0
        %1301 = vmatprep.mubr.bf16.mxu0 0
        %1302 = vmatmul.mubr.bf16.gmra.mrb[0].mxu0 %v1092
        %v1303 = vpop.f32.mrb[0].mxu0
        %v1304 = vadd.f32 %v718, %v1303
        %v1305 = vpop.f32.mrb[0].mxu0
        %v1306 = vpop.f32.mrb[0].mxu0
        %v1307 = vadd.f32 %v723, %v1306
        %v1308 = vpop.f32.mrb[0].mxu0
        %1309 = vmatprep.mubr.bf16.mxu0 0
        %1310 = vmatmul.mubr.bf16.gmra.mrb[0].mxu0 %v1095
        %v1311 = vpop.f32.mrb[0].mxu0
        %v1312 = vadd.f32 %v728, %v1311
        %v1313 = vpop.f32.mrb[0].mxu0
        %v1314 = vpop.f32.mrb[0].mxu0
        %v1315 = vadd.f32 %v733, %v1314
        %v1316 = vpop.f32.mrb[0].mxu0
        %1317 = vmatprep.mubr.bf16.mxu0 0
        %1318 = vmatmul.mubr.bf16.gmra.mrb[0].mxu0 %v1098
        %v1319 = vpop.f32.mrb[0].mxu0
        %v1320 = vadd.f32 %v738, %v1319
        %v1321 = vpop.f32.mrb[0].mxu0
        %v1322 = vpop.f32.mrb[0].mxu0
        %v1323 = vadd.f32 %v743, %v1322
        %v1324 = vpop.f32.mrb[0].mxu0
        %1325 = vmatprep.mubr.bf16.mxu0 0
        %1326 = vmatmul.mubr.bf16.gmra.mrb[0].mxu0 %v1101
        %v1327 = vpop.f32.mrb[0].mxu0
        %v1328 = vadd.f32 %v748, %v1327
        %v1329 = vpop.f32.mrb[0].mxu0
        %v1330 = vpop.f32.mrb[0].mxu0
        %v1331 = vadd.f32 %v753, %v1330
        %v1332 = vpop.f32.mrb[0].mxu0
        %1333 = vmatprep.mubr.bf16.mxu0 0
        %1334 = vmatmul.mubr.bf16.gmra.mrb[0].mxu0 %v1104
        %v1335 = vpop.f32.mrb[0].mxu0
        %v1336 = vadd.f32 %v758, %v1335
        %v1337 = vpop.f32.mrb[0].mxu0
        %v1338 = vpop.f32.mrb[0].mxu0
        %v1339 = vadd.f32 %v763, %v1338
        %v1340 = vpop.f32.mrb[0].mxu0
        %1341 = vmatprep.mubr.bf16.mxu0 0
        %1342 = vmatmul.mubr.bf16.gmra.mrb[0].mxu0 %v1107
        %v1343 = vpop.f32.mrb[0].mxu0
        %v1344 = vadd.f32 %v768, %v1343
        %v1345 = vpop.f32.mrb[0].mxu0
        %v1346 = vpop.f32.mrb[0].mxu0
        %v1347 = vadd.f32 %v773, %v1346
        %v1348 = vpop.f32.mrb[0].mxu0
        %1349 = vmatprep.mubr.bf16.mxu0 0
        %1350 = vmatmul.mubr.bf16.gmra.mrb[0].mxu0 %v1110
        %v1351 = vpop.f32.mrb[0].mxu0
        %v1352 = vadd.f32 %v778, %v1351
        %v1353 = vpop.f32.mrb[0].mxu0
        %v1354 = vpop.f32.mrb[0].mxu0
        %v1355 = vadd.f32 %v783, %v1354
        %v1356 = vpop.f32.mrb[0].mxu0
        %1357 = vmatprep.mubr.bf16.mxu0 0
        %1358 = vmatmul.mubr.bf16.gmra.mrb[0].mxu0 %v1113
        %v1359 = vpop.f32.mrb[0].mxu0
        %v1360 = vadd.f32 %v788, %v1359
        %v1361 = vpop.f32.mrb[0].mxu0
        %v1362 = vpop.f32.mrb[0].mxu0
        %v1363 = vadd.f32 %v793, %v1362
        %v1364 = vpop.f32.mrb[0].mxu0
        %1365 = vmatprep.mubr.bf16.mxu0 0
        %1366 = vmatmul.mubr.bf16.gmra.mrb[0].mxu0 %v1116
        %v1367 = vpop.f32.mrb[0].mxu0
        %v1368 = vadd.f32 %v798, %v1367
        %v1369 = vpop.f32.mrb[0].mxu0
        %v1370 = vpop.f32.mrb[0].mxu0
        %v1371 = vadd.f32 %v803, %v1370
        %v1372 = vpop.f32.mrb[0].mxu0
        %1373 = vmatprep.mubr.bf16.mxu0 0
        %1374 = vmatmul.mubr.bf16.gmra.mrb[0].mxu0 %v1119
        %v1375 = vpop.f32.mrb[0].mxu0
        %v1376 = vadd.f32 %v808, %v1375
        %v1377 = vpop.f32.mrb[0].mxu0
        %v1378 = vpop.f32.mrb[0].mxu0
        %v1379 = vadd.f32 %v813, %v1378
        %v1380 = vpop.f32.mrb[0].mxu0
        %1381 = vmatprep.mubr.bf16.mxu0 0
        %1382 = vmatmul.mubr.bf16.gmra.mrb[0].mxu0 %v1122
        %v1383 = vpop.f32.mrb[0].mxu0
        %v1384 = vadd.f32 %v818, %v1383
        %v1385 = vpop.f32.mrb[0].mxu0
        %v1386 = vpop.f32.mrb[0].mxu0
        %v1387 = vadd.f32 %v823, %v1386
        %v1388 = vpop.f32.mrb[0].mxu0
        %1389 = vmatprep.mubr.bf16.mxu0 0
        %1390 = vmatmul.mubr.bf16.gmra.mrb[0].mxu0 %v1125
        %v1391 = vpop.f32.mrb[0].mxu0
        %v1392 = vadd.f32 %v828, %v1391
        %v1393 = vpop.f32.mrb[0].mxu0
        %v1394 = vpop.f32.mrb[0].mxu0
        %v1395 = vadd.f32 %v833, %v1394
        %v1396 = vpop.f32.mrb[0].mxu0
        %1397 = vmatprep.mubr.bf16.mxu0 0
        %1398 = vmatmul.mubr.bf16.gmra.mrb[0].mxu0 %v1128
        %v1399 = vpop.f32.mrb[0].mxu0
        %v1400 = vadd.f32 %v838, %v1399
        %v1401 = vpop.f32.mrb[0].mxu0
        %v1402 = vpop.f32.mrb[0].mxu0
        %v1403 = vadd.f32 %v843, %v1402
        %v1404 = vpop.f32.mrb[0].mxu0
        %1405 = vmatprep.mubr.bf16.mxu0 0
        %1406 = vmatmul.mubr.bf16.gmra.mrb[0].mxu0 %v1131
        %v1407 = vpop.f32.mrb[0].mxu0
        %v1408 = vadd.f32 %v848, %v1407
        %v1409 = vpop.f32.mrb[0].mxu0
        %v1410 = vpop.f32.mrb[0].mxu0
        %v1411 = vadd.f32 %v853, %v1410
        %v1412 = vpop.f32.mrb[0].mxu0
        %1413 = vmatprep.mubr.bf16.mxu0 0
        %1414 = vmatmul.mubr.bf16.gmra.mrb[0].mxu0 %v1134
        %v1415 = vpop.f32.mrb[0].mxu0
        %v1416 = vadd.f32 %v858, %v1415
        %v1417 = vpop.f32.mrb[0].mxu0
        %v1418 = vpop.f32.mrb[0].mxu0
        %v1419 = vadd.f32 %v863, %v1418
        %v1420 = vpop.f32.mrb[0].mxu0
        %1421 = vmatprep.mubr.bf16.mxu0 0
        %1422 = vmatmul.mubr.bf16.gmra.mrb[0].mxu0 %v1137
        %v1423 = vpop.f32.mrb[0].mxu0
        %v1424 = vadd.f32 %v868, %v1423
        %v1425 = vpop.f32.mrb[0].mxu0
        %v1426 = vpop.f32.mrb[0].mxu0
        %v1427 = vadd.f32 %v873, %v1426
        %v1428 = vpop.f32.mrb[0].mxu0
        %1429 = vmatprep.mubr.bf16.mxu0 0
        %1430 = vmatmul.mubr.bf16.gmra.mrb[0].mxu0 %v1140
        %v1431 = vpop.f32.mrb[0].mxu0
        %v1432 = vadd.f32 %v878, %v1431
        %v1433 = vpop.f32.mrb[0].mxu0
        %v1434 = vpop.f32.mrb[0].mxu0
        %v1435 = vadd.f32 %v883, %v1434
        %v1436 = vpop.f32.mrb[0].mxu0
        %1437 = vdwg.mxu0
        %v1438 = vmax.f32 %v1184, 0.0
        %v1439 = vmax.f32 %v1187, 0.0
        %v1440 = vmax.f32 %v1192, 0.0
        %v1441 = vmax.f32 %v1195, 0.0
        %v1442 = vmax.f32 %v1200, 0.0
        %v1443 = vmax.f32 %v1203, 0.0
        %v1444 = vmax.f32 %v1208, 0.0
        %v1445 = vmax.f32 %v1211, 0.0
        %v1446 = vmax.f32 %v1216, 0.0
        %v1447 = vmax.f32 %v1219, 0.0
        %v1448 = vmax.f32 %v1224, 0.0
        %v1449 = vmax.f32 %v1227, 0.0
        %v1450 = vmax.f32 %v1232, 0.0
        %v1451 = vmax.f32 %v1235, 0.0
        %v1452 = vmax.f32 %v1240, 0.0
        %v1453 = vmax.f32 %v1243, 0.0
        %v1454 = vmax.f32 %v1248, 0.0
        %v1455 = vmax.f32 %v1251, 0.0
        %v1456 = vmax.f32 %v1256, 0.0
        %v1457 = vmax.f32 %v1259, 0.0
        %v1458 = vmax.f32 %v1264, 0.0
        %v1459 = vmax.f32 %v1267, 0.0
        %v1460 = vmax.f32 %v1272, 0.0
        %v1461 = vmax.f32 %v1275, 0.0
        %v1462 = vmax.f32 %v1280, 0.0
        %v1463 = vmax.f32 %v1283, 0.0
        %v1464 = vmax.f32 %v1288, 0.0
        %v1465 = vmax.f32 %v1291, 0.0
        %v1466 = vmax.f32 %v1296, 0.0
        %v1467 = vmax.f32 %v1299, 0.0
        %v1468 = vmax.f32 %v1304, 0.0
        %v1469 = vmax.f32 %v1307, 0.0
        %v1470 = vmax.f32 %v1312, 0.0
        %v1471 = vmax.f32 %v1315, 0.0
        %v1472 = vmax.f32 %v1320, 0.0
        %v1473 = vmax.f32 %v1323, 0.0
        %v1474 = vmax.f32 %v1328, 0.0
        %v1475 = vmax.f32 %v1331, 0.0
        %v1476 = vmax.f32 %v1336, 0.0
        %v1477 = vmax.f32 %v1339, 0.0
        %v1478 = vmax.f32 %v1344, 0.0
        %v1479 = vmax.f32 %v1347, 0.0
        %v1480 = vmax.f32 %v1352, 0.0
        %v1481 = vmax.f32 %v1355, 0.0
        %v1482 = vmax.f32 %v1360, 0.0
        %v1483 = vmax.f32 %v1363, 0.0
        %v1484 = vmax.f32 %v1368, 0.0
        %v1485 = vmax.f32 %v1371, 0.0
        %v1486 = vmax.f32 %v1376, 0.0
        %v1487 = vmax.f32 %v1379, 0.0
        %v1488 = vmax.f32 %v1384, 0.0
        %v1489 = vmax.f32 %v1387, 0.0
        %v1490 = vmax.f32 %v1392, 0.0
        %v1491 = vmax.f32 %v1395, 0.0
        %v1492 = vmax.f32 %v1400, 0.0
        %v1493 = vmax.f32 %v1403, 0.0
        %v1494 = vmax.f32 %v1408, 0.0
        %v1495 = vmax.f32 %v1411, 0.0
        %v1496 = vmax.f32 %v1416, 0.0
        %v1497 = vmax.f32 %v1419, 0.0
        %v1498 = vmax.f32 %v1424, 0.0
        %v1499 = vmax.f32 %v1427, 0.0
        %v1500 = vmax.f32 %v1432, 0.0
        %v1501 = vmax.f32 %v1435, 0.0
        %v1502 = vpack.c.bf16 %v1439, %v1438
        %v1503 = vpack.c.bf16 %v1441, %v1440
        %v1504 = vpack.c.bf16 %v1443, %v1442
        %v1505 = vpack.c.bf16 %v1445, %v1444
        %v1506 = vpack.c.bf16 %v1447, %v1446
        %v1507 = vpack.c.bf16 %v1449, %v1448
        %v1508 = vpack.c.bf16 %v1451, %v1450
        %v1509 = vpack.c.bf16 %v1453, %v1452
        %v1510 = vpack.c.bf16 %v1455, %v1454
        %v1511 = vpack.c.bf16 %v1457, %v1456
        %v1512 = vpack.c.bf16 %v1459, %v1458
        %v1513 = vpack.c.bf16 %v1461, %v1460
        %v1514 = vpack.c.bf16 %v1463, %v1462
        %v1515 = vpack.c.bf16 %v1465, %v1464
        %v1516 = vpack.c.bf16 %v1467, %v1466
        %v1517 = vpack.c.bf16 %v1469, %v1468
        %v1518 = vpack.c.bf16 %v1471, %v1470
        %v1519 = vpack.c.bf16 %v1473, %v1472
        %v1520 = vpack.c.bf16 %v1475, %v1474
        %v1521 = vpack.c.bf16 %v1477, %v1476
        %v1522 = vpack.c.bf16 %v1479, %v1478
        %v1523 = vpack.c.bf16 %v1481, %v1480
        %v1524 = vpack.c.bf16 %v1483, %v1482
        %v1525 = vpack.c.bf16 %v1485, %v1484
        %v1526 = vpack.c.bf16 %v1487, %v1486
        %v1527 = vpack.c.bf16 %v1489, %v1488
        %v1528 = vpack.c.bf16 %v1491, %v1490
        %v1529 = vpack.c.bf16 %v1493, %v1492
        %v1530 = vpack.c.bf16 %v1495, %v1494
        %v1531 = vpack.c.bf16 %v1497, %v1496
        %v1532 = vpack.c.bf16 %v1499, %v1498
        %v1533 = vpack.c.bf16 %v1501, %v1500
        %v1534 = vld [vmem:[%s3] sm:$0xff]
        %v1535 = vld [vmem:[%s3 + $0x8] sm:$0xff]
        %v1536 = vld [vmem:[%s3 + $0x10] sm:$0xff]
        %v1537 = vld [vmem:[%s3 + $0x18] sm:$0xff]
        %v1538 = vld [vmem:[%s3 + $0x20] sm:$0xff]
        %v1539 = vld [vmem:[%s3 + $0x28] sm:$0xff]
        %v1540 = vld [vmem:[%s3 + $0x30] sm:$0xff]
        %v1541 = vld [vmem:[%s3 + $0x38] sm:$0xff]
        %v1542 = vld [vmem:[%s3 + $0x40] sm:$0xff]
        %v1543 = vld [vmem:[%s3 + $0x48] sm:$0xff]
        %v1544 = vld [vmem:[%s3 + $0x50] sm:$0xff]
        %v1545 = vld [vmem:[%s3 + $0x58] sm:$0xff]
        %v1546 = vld [vmem:[%s3 + $0x60] sm:$0xff]
        %v1547 = vld [vmem:[%s3 + $0x68] sm:$0xff]
        %v1548 = vld [vmem:[%s3 + $0x70] sm:$0xff]
        %v1549 = vld [vmem:[%s3 + $0x78] sm:$0xff]
        %v1550 = vld [vmem:[%s3 + $0x80] sm:$0xff]
        %v1551 = vld [vmem:[%s3 + $0x88] sm:$0xff]
        %v1552 = vld [vmem:[%s3 + $0x90] sm:$0xff]
        %v1553 = vld [vmem:[%s3 + $0x98] sm:$0xff]
        %v1554 = vld [vmem:[%s3 + $0xa0] sm:$0xff]
        %v1555 = vld [vmem:[%s3 + $0xa8] sm:$0xff]
        %v1556 = vld [vmem:[%s3 + $0xb0] sm:$0xff]
        %v1557 = vld [vmem:[%s3 + $0xb8] sm:$0xff]
        %v1558 = vld [vmem:[%s3 + $0xc0] sm:$0xff]
        %v1559 = vld [vmem:[%s3 + $0xc8] sm:$0xff]
        %v1560 = vld [vmem:[%s3 + $0xd0] sm:$0xff]
        %v1561 = vld [vmem:[%s3 + $0xd8] sm:$0xff]
        %v1562 = vld [vmem:[%s3 + $0xe0] sm:$0xff]
        %v1563 = vld [vmem:[%s3 + $0xe8] sm:$0xff]
        %v1564 = vld [vmem:[%s3 + $0xf0] sm:$0xff]
        %v1565 = vld [vmem:[%s3 + $0xf8] sm:$0xff]
        %v1566 = vld [vmem:[%s4] sm:$0xff]
        %v1567 = vld [vmem:[%s4 + $0x8] sm:$0xff]
        %v1568 = vld [vmem:[%s4 + $0x10] sm:$0xff]
        %v1569 = vld [vmem:[%s4 + $0x18] sm:$0xff]
        %v1570 = vld [vmem:[%s4 + $0x20] sm:$0xff]
        %v1571 = vld [vmem:[%s4 + $0x28] sm:$0xff]
        %v1572 = vld [vmem:[%s4 + $0x30] sm:$0xff]
        %v1573 = vld [vmem:[%s4 + $0x38] sm:$0xff]
        %v1574 = vld [vmem:[%s4 + $0x40] sm:$0xff]
        %v1575 = vld [vmem:[%s4 + $0x48] sm:$0xff]
        %v1576 = vld [vmem:[%s4 + $0x50] sm:$0xff]
        %v1577 = vld [vmem:[%s4 + $0x58] sm:$0xff]
        %v1578 = vld [vmem:[%s4 + $0x60] sm:$0xff]
        %v1579 = vld [vmem:[%s4 + $0x68] sm:$0xff]
        %v1580 = vld [vmem:[%s4 + $0x70] sm:$0xff]
        %v1581 = vld [vmem:[%s4 + $0x78] sm:$0xff]
        %v1582 = vld [vmem:[%s4 + $0x80] sm:$0xff]
        %v1583 = vld [vmem:[%s4 + $0x88] sm:$0xff]
        %v1584 = vld [vmem:[%s4 + $0x90] sm:$0xff]
        %v1585 = vld [vmem:[%s4 + $0x98] sm:$0xff]
        %v1586 = vld [vmem:[%s4 + $0xa0] sm:$0xff]
        %v1587 = vld [vmem:[%s4 + $0xa8] sm:$0xff]
        %v1588 = vld [vmem:[%s4 + $0xb0] sm:$0xff]
        %v1589 = vld [vmem:[%s4 + $0xb8] sm:$0xff]
        %v1590 = vld [vmem:[%s4 + $0xc0] sm:$0xff]
        %v1591 = vld [vmem:[%s4 + $0xc8] sm:$0xff]
        %v1592 = vld [vmem:[%s4 + $0xd0] sm:$0xff]
        %v1593 = vld [vmem:[%s4 + $0xd8] sm:$0xff]
        %v1594 = vld [vmem:[%s4 + $0xe0] sm:$0xff]
        %v1595 = vld [vmem:[%s4 + $0xe8] sm:$0xff]
        %v1596 = vld [vmem:[%s4 + $0xf0] sm:$0xff]
        %v1597 = vld [vmem:[%s4 + $0xf8] sm:$0xff]
        %1599 = vset.pattern.permute.xlu0 0
        %1600 = vperm.xlu0 %1599, %v1566
        %v1601 = vpop.permute.xlu0 %1600
        %1604 = vset.pattern.permute.xlu0 0
        %1605 = vperm.xlu0 %1604, %v1567
        %v1606 = vpop.permute.xlu0 %1605
        %1609 = vset.pattern.permute.xlu0 0
        %1610 = vperm.xlu0 %1609, %v1568
        %v1611 = vpop.permute.xlu0 %1610
        %1614 = vset.pattern.permute.xlu0 0
        %1615 = vperm.xlu0 %1614, %v1569
        %v1616 = vpop.permute.xlu0 %1615
        %1619 = vset.pattern.permute.xlu0 0
        %1620 = vperm.xlu0 %1619, %v1570
        %v1621 = vpop.permute.xlu0 %1620
        %1624 = vset.pattern.permute.xlu0 0
        %1625 = vperm.xlu0 %1624, %v1571
        %v1626 = vpop.permute.xlu0 %1625
        %1629 = vset.pattern.permute.xlu0 0
        %1630 = vperm.xlu0 %1629, %v1572
        %v1631 = vpop.permute.xlu0 %1630
        %1634 = vset.pattern.permute.xlu0 0
        %1635 = vperm.xlu0 %1634, %v1573
        %v1636 = vpop.permute.xlu0 %1635
        %1639 = vset.pattern.permute.xlu0 0
        %1640 = vperm.xlu0 %1639, %v1574
        %v1641 = vpop.permute.xlu0 %1640
        %1644 = vset.pattern.permute.xlu0 0
        %1645 = vperm.xlu0 %1644, %v1575
        %v1646 = vpop.permute.xlu0 %1645
        %1649 = vset.pattern.permute.xlu0 0
        %1650 = vperm.xlu0 %1649, %v1576
        %v1651 = vpop.permute.xlu0 %1650
        %1654 = vset.pattern.permute.xlu0 0
        %1655 = vperm.xlu0 %1654, %v1577
        %v1656 = vpop.permute.xlu0 %1655
        %1659 = vset.pattern.permute.xlu0 0
        %1660 = vperm.xlu0 %1659, %v1578
        %v1661 = vpop.permute.xlu0 %1660
        %1664 = vset.pattern.permute.xlu0 0
        %1665 = vperm.xlu0 %1664, %v1579
        %v1666 = vpop.permute.xlu0 %1665
        %1669 = vset.pattern.permute.xlu0 0
        %1670 = vperm.xlu0 %1669, %v1580
        %v1671 = vpop.permute.xlu0 %1670
        %1674 = vset.pattern.permute.xlu0 0
        %1675 = vperm.xlu0 %1674, %v1581
        %v1676 = vpop.permute.xlu0 %1675
        %1679 = vset.pattern.permute.xlu0 0
        %1680 = vperm.xlu0 %1679, %v1582
        %v1681 = vpop.permute.xlu0 %1680
        %1684 = vset.pattern.permute.xlu0 0
        %1685 = vperm.xlu0 %1684, %v1583
        %v1686 = vpop.permute.xlu0 %1685
        %1689 = vset.pattern.permute.xlu0 0
        %1690 = vperm.xlu0 %1689, %v1584
        %v1691 = vpop.permute.xlu0 %1690
        %1694 = vset.pattern.permute.xlu0 0
        %1695 = vperm.xlu0 %1694, %v1585
        %v1696 = vpop.permute.xlu0 %1695
        %1699 = vset.pattern.permute.xlu0 0
        %1700 = vperm.xlu0 %1699, %v1586
        %v1701 = vpop.permute.xlu0 %1700
        %1704 = vset.pattern.permute.xlu0 0
        %1705 = vperm.xlu0 %1704, %v1587
        %v1706 = vpop.permute.xlu0 %1705
        %1709 = vset.pattern.permute.xlu0 0
        %1710 = vperm.xlu0 %1709, %v1588
        %v1711 = vpop.permute.xlu0 %1710
        %1714 = vset.pattern.permute.xlu0 0
        %1715 = vperm.xlu0 %1714, %v1589
        %v1716 = vpop.permute.xlu0 %1715
        %1719 = vset.pattern.permute.xlu0 0
        %1720 = vperm.xlu0 %1719, %v1590
        %v1721 = vpop.permute.xlu0 %1720
        %1724 = vset.pattern.permute.xlu0 0
        %1725 = vperm.xlu0 %1724, %v1591
        %v1726 = vpop.permute.xlu0 %1725
        %1729 = vset.pattern.permute.xlu0 0
        %1730 = vperm.xlu0 %1729, %v1592
        %v1731 = vpop.permute.xlu0 %1730
        %1734 = vset.pattern.permute.xlu0 0
        %1735 = vperm.xlu0 %1734, %v1593
        %v1736 = vpop.permute.xlu0 %1735
        %1739 = vset.pattern.permute.xlu0 0
        %1740 = vperm.xlu0 %1739, %v1594
        %v1741 = vpop.permute.xlu0 %1740
        %1744 = vset.pattern.permute.xlu0 0
        %1745 = vperm.xlu0 %1744, %v1595
        %v1746 = vpop.permute.xlu0 %1745
        %1749 = vset.pattern.permute.xlu0 0
        %1750 = vperm.xlu0 %1749, %v1596
        %v1751 = vpop.permute.xlu0 %1750
        %1754 = vset.pattern.permute.xlu0 0
        %1755 = vperm.xlu0 %1754, %v1597
        %v1756 = vpop.permute.xlu0 %1755
        %v1790 = vunpack.c.l.b16 %v1534
        %v1791 = vunpack.c.h.b16 %v1534
        %v1792 = vunpack.c.l.b16 %v1535
        %v1793 = vunpack.c.h.b16 %v1535
        %v1794 = vunpack.c.l.b16 %v1536
        %v1795 = vunpack.c.h.b16 %v1536
        %v1796 = vunpack.c.l.b16 %v1537
        %v1797 = vunpack.c.h.b16 %v1537
        %v1798 = vunpack.c.l.b16 %v1538
        %v1799 = vunpack.c.h.b16 %v1538
        %v1800 = vunpack.c.l.b16 %v1539
        %v1801 = vunpack.c.h.b16 %v1539
        %v1802 = vunpack.c.l.b16 %v1540
        %v1803 = vunpack.c.h.b16 %v1540
        %v1804 = vunpack.c.l.b16 %v1541
        %v1805 = vunpack.c.h.b16 %v1541
        %v1806 = vunpack.c.l.b16 %v1542
        %v1807 = vunpack.c.h.b16 %v1542
        %v1808 = vunpack.c.l.b16 %v1543
        %v1809 = vunpack.c.h.b16 %v1543
        %v1810 = vunpack.c.l.b16 %v1544
        %v1811 = vunpack.c.h.b16 %v1544
        %v1812 = vunpack.c.l.b16 %v1545
        %v1813 = vunpack.c.h.b16 %v1545
        %v1814 = vunpack.c.l.b16 %v1546
        %v1815 = vunpack.c.h.b16 %v1546
        %v1816 = vunpack.c.l.b16 %v1547
        %v1817 = vunpack.c.h.b16 %v1547
        %v1818 = vunpack.c.l.b16 %v1548
        %v1819 = vunpack.c.h.b16 %v1548
        %v1820 = vunpack.c.l.b16 %v1549
        %v1821 = vunpack.c.h.b16 %v1549
        %v1822 = vunpack.c.l.b16 %v1550
        %v1823 = vunpack.c.h.b16 %v1550
        %v1824 = vunpack.c.l.b16 %v1551
        %v1825 = vunpack.c.h.b16 %v1551
        %v1826 = vunpack.c.l.b16 %v1552
        %v1827 = vunpack.c.h.b16 %v1552
        %v1828 = vunpack.c.l.b16 %v1553
        %v1829 = vunpack.c.h.b16 %v1553
        %v1830 = vunpack.c.l.b16 %v1554
        %v1831 = vunpack.c.h.b16 %v1554
        %v1832 = vunpack.c.l.b16 %v1555
        %v1833 = vunpack.c.h.b16 %v1555
        %v1834 = vunpack.c.l.b16 %v1556
        %v1835 = vunpack.c.h.b16 %v1556
        %v1836 = vunpack.c.l.b16 %v1557
        %v1837 = vunpack.c.h.b16 %v1557
        %v1838 = vunpack.c.l.b16 %v1558
        %v1839 = vunpack.c.h.b16 %v1558
        %v1840 = vunpack.c.l.b16 %v1559
        %v1841 = vunpack.c.h.b16 %v1559
        %v1842 = vunpack.c.l.b16 %v1560
        %v1843 = vunpack.c.h.b16 %v1560
        %v1844 = vunpack.c.l.b16 %v1561
        %v1845 = vunpack.c.h.b16 %v1561
        %v1846 = vunpack.c.l.b16 %v1562
        %v1847 = vunpack.c.h.b16 %v1562
        %v1848 = vunpack.c.l.b16 %v1563
        %v1849 = vunpack.c.h.b16 %v1563
        %v1850 = vunpack.c.l.b16 %v1564
        %v1851 = vunpack.c.h.b16 %v1564
        %v1852 = vunpack.c.l.b16 %v1565
        %v1853 = vunpack.c.h.b16 %v1565
        %v1854 = vpack.c.b16 %v1792, %v1790
        %v1855 = vpack.c.b16 %v1793, %v1791
        %v1856 = vpack.c.b16 %v1796, %v1794
        %v1857 = vpack.c.b16 %v1797, %v1795
        %v1858 = vpack.c.b16 %v1800, %v1798
        %v1859 = vpack.c.b16 %v1801, %v1799
        %v1860 = vpack.c.b16 %v1804, %v1802
        %v1861 = vpack.c.b16 %v1805, %v1803
        %v1862 = vpack.c.b16 %v1808, %v1806
        %v1863 = vpack.c.b16 %v1809, %v1807
        %v1864 = vpack.c.b16 %v1812, %v1810
        %v1865 = vpack.c.b16 %v1813, %v1811
        %v1866 = vpack.c.b16 %v1816, %v1814
        %v1867 = vpack.c.b16 %v1817, %v1815
        %v1868 = vpack.c.b16 %v1820, %v1818
        %v1869 = vpack.c.b16 %v1821, %v1819
        %v1870 = vpack.c.b16 %v1824, %v1822
        %v1871 = vpack.c.b16 %v1825, %v1823
        %v1872 = vpack.c.b16 %v1828, %v1826
        %v1873 = vpack.c.b16 %v1829, %v1827
        %v1874 = vpack.c.b16 %v1832, %v1830
        %v1875 = vpack.c.b16 %v1833, %v1831
        %v1876 = vpack.c.b16 %v1836, %v1834
        %v1877 = vpack.c.b16 %v1837, %v1835
        %v1878 = vpack.c.b16 %v1840, %v1838
        %v1879 = vpack.c.b16 %v1841, %v1839
        %v1880 = vpack.c.b16 %v1844, %v1842
        %v1881 = vpack.c.b16 %v1845, %v1843
        %v1882 = vpack.c.b16 %v1848, %v1846
        %v1883 = vpack.c.b16 %v1849, %v1847
        %v1884 = vpack.c.b16 %v1852, %v1850
        %v1885 = vpack.c.b16 %v1853, %v1851
        %1918 = vmatprep.subr.bf16.mxu0 0
        %1919 = vmatpush1.bf16.msra.mxu0 %v1502
        %1920 = vmatprep.subr.bf16.mxu0 0
        %1921 = vmatpush1.bf16.msra.mxu0 %v1503
        %1922 = vmatprep.subr.bf16.mxu0 0
        %1923 = vmatpush1.bf16.msra.mxu0 %v1504
        %1924 = vmatprep.subr.bf16.mxu0 0
        %1925 = vmatpush1.bf16.msra.mxu0 %v1505
        %1926 = vmatprep.subr.bf16.mxu0 0
        %1927 = vmatpush1.bf16.msra.mxu0 %v1506
        %1928 = vmatprep.subr.bf16.mxu0 0
        %1929 = vmatpush1.bf16.msra.mxu0 %v1507
        %1930 = vmatprep.subr.bf16.mxu0 0
        %1931 = vmatpush1.bf16.msra.mxu0 %v1508
        %1932 = vmatprep.subr.bf16.mxu0 0
        %1933 = vmatpush1.bf16.msra.mxu0 %v1509
        %1934 = vmatprep.subr.bf16.mxu0 0
        %1935 = vmatpush1.bf16.msra.mxu0 %v1510
        %1936 = vmatprep.subr.bf16.mxu0 0
        %1937 = vmatpush1.bf16.msra.mxu0 %v1511
        %1938 = vmatprep.subr.bf16.mxu0 0
        %1939 = vmatpush1.bf16.msra.mxu0 %v1512
        %1940 = vmatprep.subr.bf16.mxu0 0
        %1941 = vmatpush1.bf16.msra.mxu0 %v1513
        %1942 = vmatprep.subr.bf16.mxu0 0
        %1943 = vmatpush1.bf16.msra.mxu0 %v1514
        %1944 = vmatprep.subr.bf16.mxu0 0
        %1945 = vmatpush1.bf16.msra.mxu0 %v1515
        %1946 = vmatprep.subr.bf16.mxu0 0
        %1947 = vmatpush1.bf16.msra.mxu0 %v1516
        %1948 = vmatprep.subr.bf16.mxu0 0
        %1949 = vmatpush1.bf16.msra.mxu0 %v1517
        %1950 = vmatprep.mubr.bf16.mxu0 %v1855
        %1951 = vmatmul.mubr.bf16.gmra.mrb[0].mxu0 %v1854
        %v1952 = vpop.f32.mrb[0].mxu0
        %v1953 = vadd.f32 %v1601, %v1952
        %v1954 = vpop.f32.mrb[0].mxu0
        %v1955 = vpop.f32.mrb[0].mxu0
        %v1956 = vadd.f32 %v1606, %v1955
        %v1957 = vpop.f32.mrb[0].mxu0
        %1958 = vmatprep.mubr.bf16.mxu0 %v1857
        %1959 = vmatmul.mubr.bf16.gmra.mrb[0].mxu0 %v1856
        %v1960 = vpop.f32.mrb[0].mxu0
        %v1961 = vadd.f32 %v1611, %v1960
        %v1962 = vpop.f32.mrb[0].mxu0
        %v1963 = vpop.f32.mrb[0].mxu0
        %v1964 = vadd.f32 %v1616, %v1963
        %v1965 = vpop.f32.mrb[0].mxu0
        %1966 = vmatprep.mubr.bf16.mxu0 %v1859
        %1967 = vmatmul.mubr.bf16.gmra.mrb[0].mxu0 %v1858
        %v1968 = vpop.f32.mrb[0].mxu0
        %v1969 = vadd.f32 %v1621, %v1968
        %v1970 = vpop.f32.mrb[0].mxu0
        %v1971 = vpop.f32.mrb[0].mxu0
        %v1972 = vadd.f32 %v1626, %v1971
        %v1973 = vpop.f32.mrb[0].mxu0
        %1974 = vmatprep.mubr.bf16.mxu0 %v1861
        %1975 = vmatmul.mubr.bf16.gmra.mrb[0].mxu0 %v1860
        %v1976 = vpop.f32.mrb[0].mxu0
        %v1977 = vadd.f32 %v1631, %v1976
        %v1978 = vpop.f32.mrb[0].mxu0
        %v1979 = vpop.f32.mrb[0].mxu0
        %v1980 = vadd.f32 %v1636, %v1979
        %v1981 = vpop.f32.mrb[0].mxu0
        %1982 = vmatprep.mubr.bf16.mxu0 %v1863
        %1983 = vmatmul.mubr.bf16.gmra.mrb[0].mxu0 %v1862
        %v1984 = vpop.f32.mrb[0].mxu0
        %v1985 = vadd.f32 %v1641, %v1984
        %v1986 = vpop.f32.mrb[0].mxu0
        %v1987 = vpop.f32.mrb[0].mxu0
        %v1988 = vadd.f32 %v1646, %v1987
        %v1989 = vpop.f32.mrb[0].mxu0
        %1990 = vmatprep.mubr.bf16.mxu0 %v1865
        %1991 = vmatmul.mubr.bf16.gmra.mrb[0].mxu0 %v1864
        %v1992 = vpop.f32.mrb[0].mxu0
        %v1993 = vadd.f32 %v1651, %v1992
        %v1994 = vpop.f32.mrb[0].mxu0
        %v1995 = vpop.f32.mrb[0].mxu0
        %v1996 = vadd.f32 %v1656, %v1995
        %v1997 = vpop.f32.mrb[0].mxu0
        %1998 = vmatprep.mubr.bf16.mxu0 %v1867
        %1999 = vmatmul.mubr.bf16.gmra.mrb[0].mxu0 %v1866
        %v2000 = vpop.f32.mrb[0].mxu0
        %v2001 = vadd.f32 %v1661, %v2000
        %v2002 = vpop.f32.mrb[0].mxu0
        %v2003 = vpop.f32.mrb[0].mxu0
        %v2004 = vadd.f32 %v1666, %v2003
        %v2005 = vpop.f32.mrb[0].mxu0
        %2006 = vmatprep.mubr.bf16.mxu0 %v1869
        %2007 = vmatmul.mubr.bf16.gmra.mrb[0].mxu0 %v1868
        %v2008 = vpop.f32.mrb[0].mxu0
        %v2009 = vadd.f32 %v1671, %v2008
        %v2010 = vpop.f32.mrb[0].mxu0
        %v2011 = vpop.f32.mrb[0].mxu0
        %v2012 = vadd.f32 %v1676, %v2011
        %v2013 = vpop.f32.mrb[0].mxu0
        %2014 = vmatprep.mubr.bf16.mxu0 %v1871
        %2015 = vmatmul.mubr.bf16.gmra.mrb[0].mxu0 %v1870
        %v2016 = vpop.f32.mrb[0].mxu0
        %v2017 = vadd.f32 %v1681, %v2016
        %v2018 = vpop.f32.mrb[0].mxu0
        %v2019 = vpop.f32.mrb[0].mxu0
        %v2020 = vadd.f32 %v1686, %v2019
        %v2021 = vpop.f32.mrb[0].mxu0
        %2022 = vmatprep.mubr.bf16.mxu0 %v1873
        %2023 = vmatmul.mubr.bf16.gmra.mrb[0].mxu0 %v1872
        %v2024 = vpop.f32.mrb[0].mxu0
        %v2025 = vadd.f32 %v1691, %v2024
        %v2026 = vpop.f32.mrb[0].mxu0
        %v2027 = vpop.f32.mrb[0].mxu0
        %v2028 = vadd.f32 %v1696, %v2027
        %v2029 = vpop.f32.mrb[0].mxu0
        %2030 = vmatprep.mubr.bf16.mxu0 %v1875
        %2031 = vmatmul.mubr.bf16.gmra.mrb[0].mxu0 %v1874
        %v2032 = vpop.f32.mrb[0].mxu0
        %v2033 = vadd.f32 %v1701, %v2032
        %v2034 = vpop.f32.mrb[0].mxu0
        %v2035 = vpop.f32.mrb[0].mxu0
        %v2036 = vadd.f32 %v1706, %v2035
        %v2037 = vpop.f32.mrb[0].mxu0
        %2038 = vmatprep.mubr.bf16.mxu0 %v1877
        %2039 = vmatmul.mubr.bf16.gmra.mrb[0].mxu0 %v1876
        %v2040 = vpop.f32.mrb[0].mxu0
        %v2041 = vadd.f32 %v1711, %v2040
        %v2042 = vpop.f32.mrb[0].mxu0
        %v2043 = vpop.f32.mrb[0].mxu0
        %v2044 = vadd.f32 %v1716, %v2043
        %v2045 = vpop.f32.mrb[0].mxu0
        %2046 = vmatprep.mubr.bf16.mxu0 %v1879
        %2047 = vmatmul.mubr.bf16.gmra.mrb[0].mxu0 %v1878
        %v2048 = vpop.f32.mrb[0].mxu0
        %v2049 = vadd.f32 %v1721, %v2048
        %v2050 = vpop.f32.mrb[0].mxu0
        %v2051 = vpop.f32.mrb[0].mxu0
        %v2052 = vadd.f32 %v1726, %v2051
        %v2053 = vpop.f32.mrb[0].mxu0
        %2054 = vmatprep.mubr.bf16.mxu0 %v1881
        %2055 = vmatmul.mubr.bf16.gmra.mrb[0].mxu0 %v1880
        %v2056 = vpop.f32.mrb[0].mxu0
        %v2057 = vadd.f32 %v1731, %v2056
        %v2058 = vpop.f32.mrb[0].mxu0
        %v2059 = vpop.f32.mrb[0].mxu0
        %v2060 = vadd.f32 %v1736, %v2059
        %v2061 = vpop.f32.mrb[0].mxu0
        %2062 = vmatprep.mubr.bf16.mxu0 %v1883
        %2063 = vmatmul.mubr.bf16.gmra.mrb[0].mxu0 %v1882
        %v2064 = vpop.f32.mrb[0].mxu0
        %v2065 = vadd.f32 %v1741, %v2064
        %v2066 = vpop.f32.mrb[0].mxu0
        %v2067 = vpop.f32.mrb[0].mxu0
        %v2068 = vadd.f32 %v1746, %v2067
        %v2069 = vpop.f32.mrb[0].mxu0
        %2070 = vmatprep.mubr.bf16.mxu0 %v1885
        %2071 = vmatmul.mubr.bf16.gmra.mrb[0].mxu0 %v1884
        %v2072 = vpop.f32.mrb[0].mxu0
        %v2073 = vadd.f32 %v1751, %v2072
        %v2074 = vpop.f32.mrb[0].mxu0
        %v2075 = vpop.f32.mrb[0].mxu0
        %v2076 = vadd.f32 %v1756, %v2075
        %v2077 = vpop.f32.mrb[0].mxu0
        %2078 = vdwg.mxu0
        %v2079 = vmax.f32 %v1953, 0.0
        %v2080 = vmax.f32 %v1956, 0.0
        %v2081 = vmax.f32 %v1961, 0.0
        %v2082 = vmax.f32 %v1964, 0.0
        %v2083 = vmax.f32 %v1969, 0.0
        %v2084 = vmax.f32 %v1972, 0.0
        %v2085 = vmax.f32 %v1977, 0.0
        %v2086 = vmax.f32 %v1980, 0.0
        %v2087 = vmax.f32 %v1985, 0.0
        %v2088 = vmax.f32 %v1988, 0.0
        %v2089 = vmax.f32 %v1993, 0.0
        %v2090 = vmax.f32 %v1996, 0.0
        %v2091 = vmax.f32 %v2001, 0.0
        %v2092 = vmax.f32 %v2004, 0.0
        %v2093 = vmax.f32 %v2009, 0.0
        %v2094 = vmax.f32 %v2012, 0.0
        %v2095 = vmax.f32 %v2017, 0.0
        %v2096 = vmax.f32 %v2020, 0.0
        %v2097 = vmax.f32 %v2025, 0.0
        %v2098 = vmax.f32 %v2028, 0.0
        %v2099 = vmax.f32 %v2033, 0.0
        %v2100 = vmax.f32 %v2036, 0.0
        %v2101 = vmax.f32 %v2041, 0.0
        %v2102 = vmax.f32 %v2044, 0.0
        %v2103 = vmax.f32 %v2049, 0.0
        %v2104 = vmax.f32 %v2052, 0.0
        %v2105 = vmax.f32 %v2057, 0.0
        %v2106 = vmax.f32 %v2060, 0.0
        %v2107 = vmax.f32 %v2065, 0.0
        %v2108 = vmax.f32 %v2068, 0.0
        %v2109 = vmax.f32 %v2073, 0.0
        %v2110 = vmax.f32 %v2076, 0.0
        %v2111 = vld [vmem:[%s7] sm:$0xff]
        %v2112 = vld [vmem:[%s7 + $0x8] sm:$0xff]
        %v2113 = vld [vmem:[%s7 + $0x10] sm:$0xff]
        %v2114 = vld [vmem:[%s7 + $0x18] sm:$0xff]
        %v2115 = vld [vmem:[%s7 + $0x20] sm:$0xff]
        %v2116 = vld [vmem:[%s7 + $0x28] sm:$0xff]
        %v2117 = vld [vmem:[%s7 + $0x30] sm:$0xff]
        %v2118 = vld [vmem:[%s7 + $0x38] sm:$0xff]
        %v2119 = vld [vmem:[%s7 + $0x40] sm:$0xff]
        %v2120 = vld [vmem:[%s7 + $0x48] sm:$0xff]
        %v2121 = vld [vmem:[%s7 + $0x50] sm:$0xff]
        %v2122 = vld [vmem:[%s7 + $0x58] sm:$0xff]
        %v2123 = vld [vmem:[%s7 + $0x60] sm:$0xff]
        %v2124 = vld [vmem:[%s7 + $0x68] sm:$0xff]
        %v2125 = vld [vmem:[%s7 + $0x70] sm:$0xff]
        %v2126 = vld [vmem:[%s7 + $0x78] sm:$0xff]
        %v2127 = vld [vmem:[%s7 + $0x80] sm:$0xff]
        %v2128 = vld [vmem:[%s7 + $0x88] sm:$0xff]
        %v2129 = vld [vmem:[%s7 + $0x90] sm:$0xff]
        %v2130 = vld [vmem:[%s7 + $0x98] sm:$0xff]
        %v2131 = vld [vmem:[%s7 + $0xa0] sm:$0xff]
        %v2132 = vld [vmem:[%s7 + $0xa8] sm:$0xff]
        %v2133 = vld [vmem:[%s7 + $0xb0] sm:$0xff]
        %v2134 = vld [vmem:[%s7 + $0xb8] sm:$0xff]
        %v2135 = vld [vmem:[%s7 + $0xc0] sm:$0xff]
        %v2136 = vld [vmem:[%s7 + $0xc8] sm:$0xff]
        %v2137 = vld [vmem:[%s7 + $0xd0] sm:$0xff]
        %v2138 = vld [vmem:[%s7 + $0xd8] sm:$0xff]
        %v2139 = vld [vmem:[%s7 + $0xe0] sm:$0xff]
        %v2140 = vld [vmem:[%s7 + $0xe8] sm:$0xff]
        %v2141 = vld [vmem:[%s7 + $0xf0] sm:$0xff]
        %v2142 = vld [vmem:[%s7 + $0xf8] sm:$0xff]
        %v2143 = vld [vmem:[%s8] sm:$0xff]
        %v2144 = vld [vmem:[%s8 + $0x8] sm:$0xff]
        %v2145 = vld [vmem:[%s8 + $0x10] sm:$0xff]
        %v2146 = vld [vmem:[%s8 + $0x18] sm:$0xff]
        %v2147 = vld [vmem:[%s8 + $0x20] sm:$0xff]
        %v2148 = vld [vmem:[%s8 + $0x28] sm:$0xff]
        %v2149 = vld [vmem:[%s8 + $0x30] sm:$0xff]
        %v2150 = vld [vmem:[%s8 + $0x38] sm:$0xff]
        %v2151 = vld [vmem:[%s8 + $0x40] sm:$0xff]
        %v2152 = vld [vmem:[%s8 + $0x48] sm:$0xff]
        %v2153 = vld [vmem:[%s8 + $0x50] sm:$0xff]
        %v2154 = vld [vmem:[%s8 + $0x58] sm:$0xff]
        %v2155 = vld [vmem:[%s8 + $0x60] sm:$0xff]
        %v2156 = vld [vmem:[%s8 + $0x68] sm:$0xff]
        %v2157 = vld [vmem:[%s8 + $0x70] sm:$0xff]
        %v2158 = vld [vmem:[%s8 + $0x78] sm:$0xff]
        %v2159 = vld [vmem:[%s8 + $0x80] sm:$0xff]
        %v2160 = vld [vmem:[%s8 + $0x88] sm:$0xff]
        %v2161 = vld [vmem:[%s8 + $0x90] sm:$0xff]
        %v2162 = vld [vmem:[%s8 + $0x98] sm:$0xff]
        %v2163 = vld [vmem:[%s8 + $0xa0] sm:$0xff]
        %v2164 = vld [vmem:[%s8 + $0xa8] sm:$0xff]
        %v2165 = vld [vmem:[%s8 + $0xb0] sm:$0xff]
        %v2166 = vld [vmem:[%s8 + $0xb8] sm:$0xff]
        %v2167 = vld [vmem:[%s8 + $0xc0] sm:$0xff]
        %v2168 = vld [vmem:[%s8 + $0xc8] sm:$0xff]
        %v2169 = vld [vmem:[%s8 + $0xd0] sm:$0xff]
        %v2170 = vld [vmem:[%s8 + $0xd8] sm:$0xff]
        %v2171 = vld [vmem:[%s8 + $0xe0] sm:$0xff]
        %v2172 = vld [vmem:[%s8 + $0xe8] sm:$0xff]
        %v2173 = vld [vmem:[%s8 + $0xf0] sm:$0xff]
        %v2174 = vld [vmem:[%s8 + $0xf8] sm:$0xff]
        %2176 = vset.pattern.permute.xlu0 0
        %2177 = vperm.xlu0 %2176, %v2143
        %v2178 = vpop.permute.xlu0 %2177
        %2181 = vset.pattern.permute.xlu0 0
        %2182 = vperm.xlu0 %2181, %v2144
        %v2183 = vpop.permute.xlu0 %2182
        %2186 = vset.pattern.permute.xlu0 0
        %2187 = vperm.xlu0 %2186, %v2145
        %v2188 = vpop.permute.xlu0 %2187
        %2191 = vset.pattern.permute.xlu0 0
        %2192 = vperm.xlu0 %2191, %v2146
        %v2193 = vpop.permute.xlu0 %2192
        %2196 = vset.pattern.permute.xlu0 0
        %2197 = vperm.xlu0 %2196, %v2147
        %v2198 = vpop.permute.xlu0 %2197
        %2201 = vset.pattern.permute.xlu0 0
        %2202 = vperm.xlu0 %2201, %v2148
        %v2203 = vpop.permute.xlu0 %2202
        %2206 = vset.pattern.permute.xlu0 0
        %2207 = vperm.xlu0 %2206, %v2149
        %v2208 = vpop.permute.xlu0 %2207
        %2211 = vset.pattern.permute.xlu0 0
        %2212 = vperm.xlu0 %2211, %v2150
        %v2213 = vpop.permute.xlu0 %2212
        %2216 = vset.pattern.permute.xlu0 0
        %2217 = vperm.xlu0 %2216, %v2151
        %v2218 = vpop.permute.xlu0 %2217
        %2221 = vset.pattern.permute.xlu0 0
        %2222 = vperm.xlu0 %2221, %v2152
        %v2223 = vpop.permute.xlu0 %2222
        %2226 = vset.pattern.permute.xlu0 0
        %2227 = vperm.xlu0 %2226, %v2153
        %v2228 = vpop.permute.xlu0 %2227
        %2231 = vset.pattern.permute.xlu0 0
        %2232 = vperm.xlu0 %2231, %v2154
        %v2233 = vpop.permute.xlu0 %2232
        %2236 = vset.pattern.permute.xlu0 0
        %2237 = vperm.xlu0 %2236, %v2155
        %v2238 = vpop.permute.xlu0 %2237
        %2241 = vset.pattern.permute.xlu0 0
        %2242 = vperm.xlu0 %2241, %v2156
        %v2243 = vpop.permute.xlu0 %2242
        %2246 = vset.pattern.permute.xlu0 0
        %2247 = vperm.xlu0 %2246, %v2157
        %v2248 = vpop.permute.xlu0 %2247
        %2251 = vset.pattern.permute.xlu0 0
        %2252 = vperm.xlu0 %2251, %v2158
        %v2253 = vpop.permute.xlu0 %2252
        %2256 = vset.pattern.permute.xlu0 0
        %2257 = vperm.xlu0 %2256, %v2159
        %v2258 = vpop.permute.xlu0 %2257
        %2261 = vset.pattern.permute.xlu0 0
        %2262 = vperm.xlu0 %2261, %v2160
        %v2263 = vpop.permute.xlu0 %2262
        %2266 = vset.pattern.permute.xlu0 0
        %2267 = vperm.xlu0 %2266, %v2161
        %v2268 = vpop.permute.xlu0 %2267
        %2271 = vset.pattern.permute.xlu0 0
        %2272 = vperm.xlu0 %2271, %v2162
        %v2273 = vpop.permute.xlu0 %2272
        %2276 = vset.pattern.permute.xlu0 0
        %2277 = vperm.xlu0 %2276, %v2163
        %v2278 = vpop.permute.xlu0 %2277
        %2281 = vset.pattern.permute.xlu0 0
        %2282 = vperm.xlu0 %2281, %v2164
        %v2283 = vpop.permute.xlu0 %2282
        %2286 = vset.pattern.permute.xlu0 0
        %2287 = vperm.xlu0 %2286, %v2165
        %v2288 = vpop.permute.xlu0 %2287
        %2291 = vset.pattern.permute.xlu0 0
        %2292 = vperm.xlu0 %2291, %v2166
        %v2293 = vpop.permute.xlu0 %2292
        %2296 = vset.pattern.permute.xlu0 0
        %2297 = vperm.xlu0 %2296, %v2167
        %v2298 = vpop.permute.xlu0 %2297
        %2301 = vset.pattern.permute.xlu0 0
        %2302 = vperm.xlu0 %2301, %v2168
        %v2303 = vpop.permute.xlu0 %2302
        %2306 = vset.pattern.permute.xlu0 0
        %2307 = vperm.xlu0 %2306, %v2169
        %v2308 = vpop.permute.xlu0 %2307
        %2311 = vset.pattern.permute.xlu0 0
        %2312 = vperm.xlu0 %2311, %v2170
        %v2313 = vpop.permute.xlu0 %2312
        %2316 = vset.pattern.permute.xlu0 0
        %2317 = vperm.xlu0 %2316, %v2171
        %v2318 = vpop.permute.xlu0 %2317
        %2321 = vset.pattern.permute.xlu0 0
        %2322 = vperm.xlu0 %2321, %v2172
        %v2323 = vpop.permute.xlu0 %2322
        %2326 = vset.pattern.permute.xlu0 0
        %2327 = vperm.xlu0 %2326, %v2173
        %v2328 = vpop.permute.xlu0 %2327
        %2331 = vset.pattern.permute.xlu0 0
        %2332 = vperm.xlu0 %2331, %v2174
        %v2333 = vpop.permute.xlu0 %2332
        %v2367 = vunpack.c.l.b16 %v2111
        %v2368 = vunpack.c.h.b16 %v2111
        %v2369 = vunpack.c.l.b16 %v2112
        %v2370 = vunpack.c.h.b16 %v2112
        %v2371 = vunpack.c.l.b16 %v2113
        %v2372 = vunpack.c.h.b16 %v2113
        %v2373 = vunpack.c.l.b16 %v2114
        %v2374 = vunpack.c.h.b16 %v2114
        %v2375 = vunpack.c.l.b16 %v2115
        %v2376 = vunpack.c.h.b16 %v2115
        %v2377 = vunpack.c.l.b16 %v2116
        %v2378 = vunpack.c.h.b16 %v2116
        %v2379 = vunpack.c.l.b16 %v2117
        %v2380 = vunpack.c.h.b16 %v2117
        %v2381 = vunpack.c.l.b16 %v2118
        %v2382 = vunpack.c.h.b16 %v2118
        %v2383 = vunpack.c.l.b16 %v2119
        %v2384 = vunpack.c.h.b16 %v2119
        %v2385 = vunpack.c.l.b16 %v2120
        %v2386 = vunpack.c.h.b16 %v2120
        %v2387 = vunpack.c.l.b16 %v2121
        %v2388 = vunpack.c.h.b16 %v2121
        %v2389 = vunpack.c.l.b16 %v2122
        %v2390 = vunpack.c.h.b16 %v2122
        %v2391 = vunpack.c.l.b16 %v2123
        %v2392 = vunpack.c.h.b16 %v2123
        %v2393 = vunpack.c.l.b16 %v2124
        %v2394 = vunpack.c.h.b16 %v2124
        %v2395 = vunpack.c.l.b16 %v2125
        %v2396 = vunpack.c.h.b16 %v2125
        %v2397 = vunpack.c.l.b16 %v2126
        %v2398 = vunpack.c.h.b16 %v2126
        %v2399 = vunpack.c.l.b16 %v2127
        %v2400 = vunpack.c.h.b16 %v2127
        %v2401 = vunpack.c.l.b16 %v2128
        %v2402 = vunpack.c.h.b16 %v2128
        %v2403 = vunpack.c.l.b16 %v2129
        %v2404 = vunpack.c.h.b16 %v2129
        %v2405 = vunpack.c.l.b16 %v2130
        %v2406 = vunpack.c.h.b16 %v2130
        %v2407 = vunpack.c.l.b16 %v2131
        %v2408 = vunpack.c.h.b16 %v2131
        %v2409 = vunpack.c.l.b16 %v2132
        %v2410 = vunpack.c.h.b16 %v2132
        %v2411 = vunpack.c.l.b16 %v2133
        %v2412 = vunpack.c.h.b16 %v2133
        %v2413 = vunpack.c.l.b16 %v2134
        %v2414 = vunpack.c.h.b16 %v2134
        %v2415 = vunpack.c.l.b16 %v2135
        %v2416 = vunpack.c.h.b16 %v2135
        %v2417 = vunpack.c.l.b16 %v2136
        %v2418 = vunpack.c.h.b16 %v2136
        %v2419 = vunpack.c.l.b16 %v2137
        %v2420 = vunpack.c.h.b16 %v2137
        %v2421 = vunpack.c.l.b16 %v2138
        %v2422 = vunpack.c.h.b16 %v2138
        %v2423 = vunpack.c.l.b16 %v2139
        %v2424 = vunpack.c.h.b16 %v2139
        %v2425 = vunpack.c.l.b16 %v2140
        %v2426 = vunpack.c.h.b16 %v2140
        %v2427 = vunpack.c.l.b16 %v2141
        %v2428 = vunpack.c.h.b16 %v2141
        %v2429 = vunpack.c.l.b16 %v2142
        %v2430 = vunpack.c.h.b16 %v2142
        %v2431 = vpack.c.b16 %v2369, %v2367
        %v2432 = vpack.c.b16 %v2370, %v2368
        %v2433 = vpack.c.b16 %v2373, %v2371
        %v2434 = vpack.c.b16 %v2374, %v2372
        %v2435 = vpack.c.b16 %v2377, %v2375
        %v2436 = vpack.c.b16 %v2378, %v2376
        %v2437 = vpack.c.b16 %v2381, %v2379
        %v2438 = vpack.c.b16 %v2382, %v2380
        %v2439 = vpack.c.b16 %v2385, %v2383
        %v2440 = vpack.c.b16 %v2386, %v2384
        %v2441 = vpack.c.b16 %v2389, %v2387
        %v2442 = vpack.c.b16 %v2390, %v2388
        %v2443 = vpack.c.b16 %v2393, %v2391
        %v2444 = vpack.c.b16 %v2394, %v2392
        %v2445 = vpack.c.b16 %v2397, %v2395
        %v2446 = vpack.c.b16 %v2398, %v2396
        %v2447 = vpack.c.b16 %v2401, %v2399
        %v2448 = vpack.c.b16 %v2402, %v2400
        %v2449 = vpack.c.b16 %v2405, %v2403
        %v2450 = vpack.c.b16 %v2406, %v2404
        %v2451 = vpack.c.b16 %v2409, %v2407
        %v2452 = vpack.c.b16 %v2410, %v2408
        %v2453 = vpack.c.b16 %v2413, %v2411
        %v2454 = vpack.c.b16 %v2414, %v2412
        %v2455 = vpack.c.b16 %v2417, %v2415
        %v2456 = vpack.c.b16 %v2418, %v2416
        %v2457 = vpack.c.b16 %v2421, %v2419
        %v2458 = vpack.c.b16 %v2422, %v2420
        %v2459 = vpack.c.b16 %v2425, %v2423
        %v2460 = vpack.c.b16 %v2426, %v2424
        %v2461 = vpack.c.b16 %v2429, %v2427
        %v2462 = vpack.c.b16 %v2430, %v2428
        %2495 = vmatprep.subr.bf16.mxu0 0
        %2496 = vmatpush1.bf16.msra.mxu0 %v1518
        %2497 = vmatprep.subr.bf16.mxu0 0
        %2498 = vmatpush1.bf16.msra.mxu0 %v1519
        %2499 = vmatprep.subr.bf16.mxu0 0
        %2500 = vmatpush1.bf16.msra.mxu0 %v1520
        %2501 = vmatprep.subr.bf16.mxu0 0
        %2502 = vmatpush1.bf16.msra.mxu0 %v1521
        %2503 = vmatprep.subr.bf16.mxu0 0
        %2504 = vmatpush1.bf16.msra.mxu0 %v1522
        %2505 = vmatprep.subr.bf16.mxu0 0
        %2506 = vmatpush1.bf16.msra.mxu0 %v1523
        %2507 = vmatprep.subr.bf16.mxu0 0
        %2508 = vmatpush1.bf16.msra.mxu0 %v1524
        %2509 = vmatprep.subr.bf16.mxu0 0
        %2510 = vmatpush1.bf16.msra.mxu0 %v1525
        %2511 = vmatprep.subr.bf16.mxu0 0
        %2512 = vmatpush1.bf16.msra.mxu0 %v1526
        %2513 = vmatprep.subr.bf16.mxu0 0
        %2514 = vmatpush1.bf16.msra.mxu0 %v1527
        %2515 = vmatprep.subr.bf16.mxu0 0
        %2516 = vmatpush1.bf16.msra.mxu0 %v1528
        %2517 = vmatprep.subr.bf16.mxu0 0
        %2518 = vmatpush1.bf16.msra.mxu0 %v1529
        %2519 = vmatprep.subr.bf16.mxu0 0
        %2520 = vmatpush1.bf16.msra.mxu0 %v1530
        %2521 = vmatprep.subr.bf16.mxu0 0
        %2522 = vmatpush1.bf16.msra.mxu0 %v1531
        %2523 = vmatprep.subr.bf16.mxu0 0
        %2524 = vmatpush1.bf16.msra.mxu0 %v1532
        %2525 = vmatprep.subr.bf16.mxu0 0
        %2526 = vmatpush1.bf16.msra.mxu0 %v1533
        %2527 = vmatprep.mubr.bf16.mxu0 %v2432
        %2528 = vmatmul.mubr.bf16.gmra.mrb[0].mxu0 %v2431
        %v2529 = vpop.f32.mrb[0].mxu0
        %v2530 = vadd.f32 %v2178, %v2529
        %v2531 = vpop.f32.mrb[0].mxu0
        %v2532 = vpop.f32.mrb[0].mxu0
        %v2533 = vadd.f32 %v2183, %v2532
        %v2534 = vpop.f32.mrb[0].mxu0
        %2535 = vmatprep.mubr.bf16.mxu0 %v2434
        %2536 = vmatmul.mubr.bf16.gmra.mrb[0].mxu0 %v2433
        %v2537 = vpop.f32.mrb[0].mxu0
        %v2538 = vadd.f32 %v2188, %v2537
        %v2539 = vpop.f32.mrb[0].mxu0
        %v2540 = vpop.f32.mrb[0].mxu0
        %v2541 = vadd.f32 %v2193, %v2540
        %v2542 = vpop.f32.mrb[0].mxu0
        %2543 = vmatprep.mubr.bf16.mxu0 %v2436
        %2544 = vmatmul.mubr.bf16.gmra.mrb[0].mxu0 %v2435
        %v2545 = vpop.f32.mrb[0].mxu0
        %v2546 = vadd.f32 %v2198, %v2545
        %v2547 = vpop.f32.mrb[0].mxu0
        %v2548 = vpop.f32.mrb[0].mxu0
        %v2549 = vadd.f32 %v2203, %v2548
        %v2550 = vpop.f32.mrb[0].mxu0
        %2551 = vmatprep.mubr.bf16.mxu0 %v2438
        %2552 = vmatmul.mubr.bf16.gmra.mrb[0].mxu0 %v2437
        %v2553 = vpop.f32.mrb[0].mxu0
        %v2554 = vadd.f32 %v2208, %v2553
        %v2555 = vpop.f32.mrb[0].mxu0
        %v2556 = vpop.f32.mrb[0].mxu0
        %v2557 = vadd.f32 %v2213, %v2556
        %v2558 = vpop.f32.mrb[0].mxu0
        %2559 = vmatprep.mubr.bf16.mxu0 %v2440
        %2560 = vmatmul.mubr.bf16.gmra.mrb[0].mxu0 %v2439
        %v2561 = vpop.f32.mrb[0].mxu0
        %v2562 = vadd.f32 %v2218, %v2561
        %v2563 = vpop.f32.mrb[0].mxu0
        %v2564 = vpop.f32.mrb[0].mxu0
        %v2565 = vadd.f32 %v2223, %v2564
        %v2566 = vpop.f32.mrb[0].mxu0
        %2567 = vmatprep.mubr.bf16.mxu0 %v2442
        %2568 = vmatmul.mubr.bf16.gmra.mrb[0].mxu0 %v2441
        %v2569 = vpop.f32.mrb[0].mxu0
        %v2570 = vadd.f32 %v2228, %v2569
        %v2571 = vpop.f32.mrb[0].mxu0
        %v2572 = vpop.f32.mrb[0].mxu0
        %v2573 = vadd.f32 %v2233, %v2572
        %v2574 = vpop.f32.mrb[0].mxu0
        %2575 = vmatprep.mubr.bf16.mxu0 %v2444
        %2576 = vmatmul.mubr.bf16.gmra.mrb[0].mxu0 %v2443
        %v2577 = vpop.f32.mrb[0].mxu0
        %v2578 = vadd.f32 %v2238, %v2577
        %v2579 = vpop.f32.mrb[0].mxu0
        %v2580 = vpop.f32.mrb[0].mxu0
        %v2581 = vadd.f32 %v2243, %v2580
        %v2582 = vpop.f32.mrb[0].mxu0
        %2583 = vmatprep.mubr.bf16.mxu0 %v2446
        %2584 = vmatmul.mubr.bf16.gmra.mrb[0].mxu0 %v2445
        %v2585 = vpop.f32.mrb[0].mxu0
        %v2586 = vadd.f32 %v2248, %v2585
        %v2587 = vpop.f32.mrb[0].mxu0
        %v2588 = vpop.f32.mrb[0].mxu0
        %v2589 = vadd.f32 %v2253, %v2588
        %v2590 = vpop.f32.mrb[0].mxu0
        %2591 = vmatprep.mubr.bf16.mxu0 %v2448
        %2592 = vmatmul.mubr.bf16.gmra.mrb[0].mxu0 %v2447
        %v2593 = vpop.f32.mrb[0].mxu0
        %v2594 = vadd.f32 %v2258, %v2593
        %v2595 = vpop.f32.mrb[0].mxu0
        %v2596 = vpop.f32.mrb[0].mxu0
        %v2597 = vadd.f32 %v2263, %v2596
        %v2598 = vpop.f32.mrb[0].mxu0
        %2599 = vmatprep.mubr.bf16.mxu0 %v2450
        %2600 = vmatmul.mubr.bf16.gmra.mrb[0].mxu0 %v2449
        %v2601 = vpop.f32.mrb[0].mxu0
        %v2602 = vadd.f32 %v2268, %v2601
        %v2603 = vpop.f32.mrb[0].mxu0
        %v2604 = vpop.f32.mrb[0].mxu0
        %v2605 = vadd.f32 %v2273, %v2604
        %v2606 = vpop.f32.mrb[0].mxu0
        %2607 = vmatprep.mubr.bf16.mxu0 %v2452
        %2608 = vmatmul.mubr.bf16.gmra.mrb[0].mxu0 %v2451
        %v2609 = vpop.f32.mrb[0].mxu0
        %v2610 = vadd.f32 %v2278, %v2609
        %v2611 = vpop.f32.mrb[0].mxu0
        %v2612 = vpop.f32.mrb[0].mxu0
        %v2613 = vadd.f32 %v2283, %v2612
        %v2614 = vpop.f32.mrb[0].mxu0
        %2615 = vmatprep.mubr.bf16.mxu0 %v2454
        %2616 = vmatmul.mubr.bf16.gmra.mrb[0].mxu0 %v2453
        %v2617 = vpop.f32.mrb[0].mxu0
        %v2618 = vadd.f32 %v2288, %v2617
        %v2619 = vpop.f32.mrb[0].mxu0
        %v2620 = vpop.f32.mrb[0].mxu0
        %v2621 = vadd.f32 %v2293, %v2620
        %v2622 = vpop.f32.mrb[0].mxu0
        %2623 = vmatprep.mubr.bf16.mxu0 %v2456
        %2624 = vmatmul.mubr.bf16.gmra.mrb[0].mxu0 %v2455
        %v2625 = vpop.f32.mrb[0].mxu0
        %v2626 = vadd.f32 %v2298, %v2625
        %v2627 = vpop.f32.mrb[0].mxu0
        %v2628 = vpop.f32.mrb[0].mxu0
        %v2629 = vadd.f32 %v2303, %v2628
        %v2630 = vpop.f32.mrb[0].mxu0
        %2631 = vmatprep.mubr.bf16.mxu0 %v2458
        %2632 = vmatmul.mubr.bf16.gmra.mrb[0].mxu0 %v2457
        %v2633 = vpop.f32.mrb[0].mxu0
        %v2634 = vadd.f32 %v2308, %v2633
        %v2635 = vpop.f32.mrb[0].mxu0
        %v2636 = vpop.f32.mrb[0].mxu0
        %v2637 = vadd.f32 %v2313, %v2636
        %v2638 = vpop.f32.mrb[0].mxu0
        %2639 = vmatprep.mubr.bf16.mxu0 %v2460
        %2640 = vmatmul.mubr.bf16.gmra.mrb[0].mxu0 %v2459
        %v2641 = vpop.f32.mrb[0].mxu0
        %v2642 = vadd.f32 %v2318, %v2641
        %v2643 = vpop.f32.mrb[0].mxu0
        %v2644 = vpop.f32.mrb[0].mxu0
        %v2645 = vadd.f32 %v2323, %v2644
        %v2646 = vpop.f32.mrb[0].mxu0
        %2647 = vmatprep.mubr.bf16.mxu0 %v2462
        %2648 = vmatmul.mubr.bf16.gmra.mrb[0].mxu0 %v2461
        %v2649 = vpop.f32.mrb[0].mxu0
        %v2650 = vadd.f32 %v2328, %v2649
        %v2651 = vpop.f32.mrb[0].mxu0
        %v2652 = vpop.f32.mrb[0].mxu0
        %v2653 = vadd.f32 %v2333, %v2652
        %v2654 = vpop.f32.mrb[0].mxu0
        %2655 = vdwg.mxu0
        %v2656 = vmax.f32 %v2530, 0.0
        %v2657 = vmax.f32 %v2533, 0.0
        %v2658 = vmax.f32 %v2538, 0.0
        %v2659 = vmax.f32 %v2541, 0.0
        %v2660 = vmax.f32 %v2546, 0.0
        %v2661 = vmax.f32 %v2549, 0.0
        %v2662 = vmax.f32 %v2554, 0.0
        %v2663 = vmax.f32 %v2557, 0.0
        %v2664 = vmax.f32 %v2562, 0.0
        %v2665 = vmax.f32 %v2565, 0.0
        %v2666 = vmax.f32 %v2570, 0.0
        %v2667 = vmax.f32 %v2573, 0.0
        %v2668 = vmax.f32 %v2578, 0.0
        %v2669 = vmax.f32 %v2581, 0.0
        %v2670 = vmax.f32 %v2586, 0.0
        %v2671 = vmax.f32 %v2589, 0.0
        %v2672 = vmax.f32 %v2594, 0.0
        %v2673 = vmax.f32 %v2597, 0.0
        %v2674 = vmax.f32 %v2602, 0.0
        %v2675 = vmax.f32 %v2605, 0.0
        %v2676 = vmax.f32 %v2610, 0.0
        %v2677 = vmax.f32 %v2613, 0.0
        %v2678 = vmax.f32 %v2618, 0.0
        %v2679 = vmax.f32 %v2621, 0.0
        %v2680 = vmax.f32 %v2626, 0.0
        %v2681 = vmax.f32 %v2629, 0.0
        %v2682 = vmax.f32 %v2634, 0.0
        %v2683 = vmax.f32 %v2637, 0.0
        %v2684 = vmax.f32 %v2642, 0.0
        %v2685 = vmax.f32 %v2645, 0.0
        %v2686 = vmax.f32 %v2650, 0.0
        %v2687 = vmax.f32 %v2653, 0.0
        %v2688 = vld [vmem:[%s5] sm:$0xff]
        %v2689 = vld [vmem:[%s5 + $0x8] sm:$0xff]
        %v2690 = vld [vmem:[%s5 + $0x10] sm:$0xff]
        %v2691 = vld [vmem:[%s5 + $0x18] sm:$0xff]
        %v2692 = vld [vmem:[%s5 + $0x20] sm:$0xff]
        %v2693 = vld [vmem:[%s5 + $0x28] sm:$0xff]
        %v2694 = vld [vmem:[%s5 + $0x30] sm:$0xff]
        %v2695 = vld [vmem:[%s5 + $0x38] sm:$0xff]
        %v2696 = vld [vmem:[%s5 + $0x40] sm:$0xff]
        %v2697 = vld [vmem:[%s5 + $0x48] sm:$0xff]
        %v2698 = vld [vmem:[%s5 + $0x50] sm:$0xff]
        %v2699 = vld [vmem:[%s5 + $0x58] sm:$0xff]
        %v2700 = vld [vmem:[%s5 + $0x60] sm:$0xff]
        %v2701 = vld [vmem:[%s5 + $0x68] sm:$0xff]
        %v2702 = vld [vmem:[%s5 + $0x70] sm:$0xff]
        %v2703 = vld [vmem:[%s5 + $0x78] sm:$0xff]
        %v2704 = vld [vmem:[%s5 + $0x80] sm:$0xff]
        %v2705 = vld [vmem:[%s5 + $0x88] sm:$0xff]
        %v2706 = vld [vmem:[%s5 + $0x90] sm:$0xff]
        %v2707 = vld [vmem:[%s5 + $0x98] sm:$0xff]
        %v2708 = vld [vmem:[%s5 + $0xa0] sm:$0xff]
        %v2709 = vld [vmem:[%s5 + $0xa8] sm:$0xff]
        %v2710 = vld [vmem:[%s5 + $0xb0] sm:$0xff]
        %v2711 = vld [vmem:[%s5 + $0xb8] sm:$0xff]
        %v2712 = vld [vmem:[%s5 + $0xc0] sm:$0xff]
        %v2713 = vld [vmem:[%s5 + $0xc8] sm:$0xff]
        %v2714 = vld [vmem:[%s5 + $0xd0] sm:$0xff]
        %v2715 = vld [vmem:[%s5 + $0xd8] sm:$0xff]
        %v2716 = vld [vmem:[%s5 + $0xe0] sm:$0xff]
        %v2717 = vld [vmem:[%s5 + $0xe8] sm:$0xff]
        %v2718 = vld [vmem:[%s5 + $0xf0] sm:$0xff]
        %v2719 = vld [vmem:[%s5 + $0xf8] sm:$0xff]
        %2721 = vset.pattern.permute.xlu0 0
        %2722 = vperm.xlu0 %2721, %v2688
        %v2723 = vpop.permute.xlu0 %2722
        %2726 = vset.pattern.permute.xlu0 0
        %2727 = vperm.xlu0 %2726, %v2689
        %v2728 = vpop.permute.xlu0 %2727
        %2731 = vset.pattern.permute.xlu0 0
        %2732 = vperm.xlu0 %2731, %v2690
        %v2733 = vpop.permute.xlu0 %2732
        %2736 = vset.pattern.permute.xlu0 0
        %2737 = vperm.xlu0 %2736, %v2691
        %v2738 = vpop.permute.xlu0 %2737
        %2741 = vset.pattern.permute.xlu0 0
        %2742 = vperm.xlu0 %2741, %v2692
        %v2743 = vpop.permute.xlu0 %2742
        %2746 = vset.pattern.permute.xlu0 0
        %2747 = vperm.xlu0 %2746, %v2693
        %v2748 = vpop.permute.xlu0 %2747
        %2751 = vset.pattern.permute.xlu0 0
        %2752 = vperm.xlu0 %2751, %v2694
        %v2753 = vpop.permute.xlu0 %2752
        %2756 = vset.pattern.permute.xlu0 0
        %2757 = vperm.xlu0 %2756, %v2695
        %v2758 = vpop.permute.xlu0 %2757
        %2761 = vset.pattern.permute.xlu0 0
        %2762 = vperm.xlu0 %2761, %v2696
        %v2763 = vpop.permute.xlu0 %2762
        %2766 = vset.pattern.permute.xlu0 0
        %2767 = vperm.xlu0 %2766, %v2697
        %v2768 = vpop.permute.xlu0 %2767
        %2771 = vset.pattern.permute.xlu0 0
        %2772 = vperm.xlu0 %2771, %v2698
        %v2773 = vpop.permute.xlu0 %2772
        %2776 = vset.pattern.permute.xlu0 0
        %2777 = vperm.xlu0 %2776, %v2699
        %v2778 = vpop.permute.xlu0 %2777
        %2781 = vset.pattern.permute.xlu0 0
        %2782 = vperm.xlu0 %2781, %v2700
        %v2783 = vpop.permute.xlu0 %2782
        %2786 = vset.pattern.permute.xlu0 0
        %2787 = vperm.xlu0 %2786, %v2701
        %v2788 = vpop.permute.xlu0 %2787
        %2791 = vset.pattern.permute.xlu0 0
        %2792 = vperm.xlu0 %2791, %v2702
        %v2793 = vpop.permute.xlu0 %2792
        %2796 = vset.pattern.permute.xlu0 0
        %2797 = vperm.xlu0 %2796, %v2703
        %v2798 = vpop.permute.xlu0 %2797
        %2801 = vset.pattern.permute.xlu0 0
        %2802 = vperm.xlu0 %2801, %v2704
        %v2803 = vpop.permute.xlu0 %2802
        %2806 = vset.pattern.permute.xlu0 0
        %2807 = vperm.xlu0 %2806, %v2705
        %v2808 = vpop.permute.xlu0 %2807
        %2811 = vset.pattern.permute.xlu0 0
        %2812 = vperm.xlu0 %2811, %v2706
        %v2813 = vpop.permute.xlu0 %2812
        %2816 = vset.pattern.permute.xlu0 0
        %2817 = vperm.xlu0 %2816, %v2707
        %v2818 = vpop.permute.xlu0 %2817
        %2821 = vset.pattern.permute.xlu0 0
        %2822 = vperm.xlu0 %2821, %v2708
        %v2823 = vpop.permute.xlu0 %2822
        %2826 = vset.pattern.permute.xlu0 0
        %2827 = vperm.xlu0 %2826, %v2709
        %v2828 = vpop.permute.xlu0 %2827
        %2831 = vset.pattern.permute.xlu0 0
        %2832 = vperm.xlu0 %2831, %v2710
        %v2833 = vpop.permute.xlu0 %2832
        %2836 = vset.pattern.permute.xlu0 0
        %2837 = vperm.xlu0 %2836, %v2711
        %v2838 = vpop.permute.xlu0 %2837
        %2841 = vset.pattern.permute.xlu0 0
        %2842 = vperm.xlu0 %2841, %v2712
        %v2843 = vpop.permute.xlu0 %2842
        %2846 = vset.pattern.permute.xlu0 0
        %2847 = vperm.xlu0 %2846, %v2713
        %v2848 = vpop.permute.xlu0 %2847
        %2851 = vset.pattern.permute.xlu0 0
        %2852 = vperm.xlu0 %2851, %v2714
        %v2853 = vpop.permute.xlu0 %2852
        %2856 = vset.pattern.permute.xlu0 0
        %2857 = vperm.xlu0 %2856, %v2715
        %v2858 = vpop.permute.xlu0 %2857
        %2861 = vset.pattern.permute.xlu0 0
        %2862 = vperm.xlu0 %2861, %v2716
        %v2863 = vpop.permute.xlu0 %2862
        %2866 = vset.pattern.permute.xlu0 0
        %2867 = vperm.xlu0 %2866, %v2717
        %v2868 = vpop.permute.xlu0 %2867
        %2871 = vset.pattern.permute.xlu0 0
        %2872 = vperm.xlu0 %2871, %v2718
        %v2873 = vpop.permute.xlu0 %2872
        %2876 = vset.pattern.permute.xlu0 0
        %2877 = vperm.xlu0 %2876, %v2719
        %v2878 = vpop.permute.xlu0 %2877
        %v2880 = vmul.f32 %v2079, %v2723
        %v2881 = vmul.f32 %v2080, %v2728
        %v2882 = vmul.f32 %v2081, %v2733
        %v2883 = vmul.f32 %v2082, %v2738
        %v2884 = vmul.f32 %v2083, %v2743
        %v2885 = vmul.f32 %v2084, %v2748
        %v2886 = vmul.f32 %v2085, %v2753
        %v2887 = vmul.f32 %v2086, %v2758
        %v2888 = vmul.f32 %v2087, %v2763
        %v2889 = vmul.f32 %v2088, %v2768
        %v2890 = vmul.f32 %v2089, %v2773
        %v2891 = vmul.f32 %v2090, %v2778
        %v2892 = vmul.f32 %v2091, %v2783
        %v2893 = vmul.f32 %v2092, %v2788
        %v2894 = vmul.f32 %v2093, %v2793
        %v2895 = vmul.f32 %v2094, %v2798
        %v2896 = vmul.f32 %v2095, %v2803
        %v2897 = vmul.f32 %v2096, %v2808
        %v2898 = vmul.f32 %v2097, %v2813
        %v2899 = vmul.f32 %v2098, %v2818
        %v2900 = vmul.f32 %v2099, %v2823
        %v2901 = vmul.f32 %v2100, %v2828
        %v2902 = vmul.f32 %v2101, %v2833
        %v2903 = vmul.f32 %v2102, %v2838
        %v2904 = vmul.f32 %v2103, %v2843
        %v2905 = vmul.f32 %v2104, %v2848
        %v2906 = vmul.f32 %v2105, %v2853
        %v2907 = vmul.f32 %v2106, %v2858
        %v2908 = vmul.f32 %v2107, %v2863
        %v2909 = vmul.f32 %v2108, %v2868
        %v2910 = vmul.f32 %v2109, %v2873
        %v2911 = vmul.f32 %v2110, %v2878
        %v2912 = vadd.f32 %v2880, %v2881
        %v2913 = vadd.f32 %v2912, %v2882
        %v2914 = vadd.f32 %v2913, %v2883
        %v2915 = vadd.f32 %v2914, %v2884
        %v2916 = vadd.f32 %v2915, %v2885
        %v2917 = vadd.f32 %v2916, %v2886
        %v2918 = vadd.f32 %v2917, %v2887
        %v2919 = vadd.f32 %v2918, %v2888
        %v2920 = vadd.f32 %v2919, %v2889
        %v2921 = vadd.f32 %v2920, %v2890
        %v2922 = vadd.f32 %v2921, %v2891
        %v2923 = vadd.f32 %v2922, %v2892
        %v2924 = vadd.f32 %v2923, %v2893
        %v2925 = vadd.f32 %v2924, %v2894
        %v2926 = vadd.f32 %v2925, %v2895
        %v2927 = vadd.f32 %v2926, %v2896
        %v2928 = vadd.f32 %v2927, %v2897
        %v2929 = vadd.f32 %v2928, %v2898
        %v2930 = vadd.f32 %v2929, %v2899
        %v2931 = vadd.f32 %v2930, %v2900
        %v2932 = vadd.f32 %v2931, %v2901
        %v2933 = vadd.f32 %v2932, %v2902
        %v2934 = vadd.f32 %v2933, %v2903
        %v2935 = vadd.f32 %v2934, %v2904
        %v2936 = vadd.f32 %v2935, %v2905
        %v2937 = vadd.f32 %v2936, %v2906
        %v2938 = vadd.f32 %v2937, %v2907
        %v2939 = vadd.f32 %v2938, %v2908
        %v2940 = vadd.f32 %v2939, %v2909
        %v2941 = vadd.f32 %v2940, %v2910
        %v2942 = vadd.f32 %v2941, %v2911
        %v2943 = vrot.slane %v2942, 4
        %v2944 = vadd.f32 %v2942, %v2943
        %v2945 = vrot.slane %v2944, 2
        %v2946 = vadd.f32 %v2944, %v2945
        %v2947 = vrot.slane %v2946, 1
        %v2948 = vadd.f32 %v2946, %v2947
        %v2949 = vld [vmem:[#allocation2] sm:$0x1]
        %2951 = vset.pattern.permute.xlu0 0
        %2952 = vperm.xlu0 %2951, %v2949
        %v2953 = vpop.permute.xlu0 %2952
        %v2955 = vlaneseq
        %v2956 = vshrl.u32 %v2955, 7
        %v2957 = vsub.s32 0, %v2956
        %v2958 = vrot.slane %v2953, %v2957
        %v2959 = vadd.f32 %v2948, %v2958
        %v2960 = vld [vmem:[%s9] sm:$0xff]
        %v2961 = vld [vmem:[%s9 + $0x8] sm:$0xff]
        %v2962 = vld [vmem:[%s9 + $0x10] sm:$0xff]
        %v2963 = vld [vmem:[%s9 + $0x18] sm:$0xff]
        %v2964 = vld [vmem:[%s9 + $0x20] sm:$0xff]
        %v2965 = vld [vmem:[%s9 + $0x28] sm:$0xff]
        %v2966 = vld [vmem:[%s9 + $0x30] sm:$0xff]
        %v2967 = vld [vmem:[%s9 + $0x38] sm:$0xff]
        %v2968 = vld [vmem:[%s9 + $0x40] sm:$0xff]
        %v2969 = vld [vmem:[%s9 + $0x48] sm:$0xff]
        %v2970 = vld [vmem:[%s9 + $0x50] sm:$0xff]
        %v2971 = vld [vmem:[%s9 + $0x58] sm:$0xff]
        %v2972 = vld [vmem:[%s9 + $0x60] sm:$0xff]
        %v2973 = vld [vmem:[%s9 + $0x68] sm:$0xff]
        %v2974 = vld [vmem:[%s9 + $0x70] sm:$0xff]
        %v2975 = vld [vmem:[%s9 + $0x78] sm:$0xff]
        %v2976 = vld [vmem:[%s9 + $0x80] sm:$0xff]
        %v2977 = vld [vmem:[%s9 + $0x88] sm:$0xff]
        %v2978 = vld [vmem:[%s9 + $0x90] sm:$0xff]
        %v2979 = vld [vmem:[%s9 + $0x98] sm:$0xff]
        %v2980 = vld [vmem:[%s9 + $0xa0] sm:$0xff]
        %v2981 = vld [vmem:[%s9 + $0xa8] sm:$0xff]
        %v2982 = vld [vmem:[%s9 + $0xb0] sm:$0xff]
        %v2983 = vld [vmem:[%s9 + $0xb8] sm:$0xff]
        %v2984 = vld [vmem:[%s9 + $0xc0] sm:$0xff]
        %v2985 = vld [vmem:[%s9 + $0xc8] sm:$0xff]
        %v2986 = vld [vmem:[%s9 + $0xd0] sm:$0xff]
        %v2987 = vld [vmem:[%s9 + $0xd8] sm:$0xff]
        %v2988 = vld [vmem:[%s9 + $0xe0] sm:$0xff]
        %v2989 = vld [vmem:[%s9 + $0xe8] sm:$0xff]
        %v2990 = vld [vmem:[%s9 + $0xf0] sm:$0xff]
        %v2991 = vld [vmem:[%s9 + $0xf8] sm:$0xff]
        %2993 = vset.pattern.permute.xlu0 0
        %2994 = vperm.xlu0 %2993, %v2960
        %v2995 = vpop.permute.xlu0 %2994
        %2998 = vset.pattern.permute.xlu0 0
        %2999 = vperm.xlu0 %2998, %v2961
        %v3000 = vpop.permute.xlu0 %2999
        %3003 = vset.pattern.permute.xlu0 0
        %3004 = vperm.xlu0 %3003, %v2962
        %v3005 = vpop.permute.xlu0 %3004
        %3008 = vset.pattern.permute.xlu0 0
        %3009 = vperm.xlu0 %3008, %v2963
        %v3010 = vpop.permute.xlu0 %3009
        %3013 = vset.pattern.permute.xlu0 0
        %3014 = vperm.xlu0 %3013, %v2964
        %v3015 = vpop.permute.xlu0 %3014
        %3018 = vset.pattern.permute.xlu0 0
        %3019 = vperm.xlu0 %3018, %v2965
        %v3020 = vpop.permute.xlu0 %3019
        %3023 = vset.pattern.permute.xlu0 0
        %3024 = vperm.xlu0 %3023, %v2966
        %v3025 = vpop.permute.xlu0 %3024
        %3028 = vset.pattern.permute.xlu0 0
        %3029 = vperm.xlu0 %3028, %v2967
        %v3030 = vpop.permute.xlu0 %3029
        %3033 = vset.pattern.permute.xlu0 0
        %3034 = vperm.xlu0 %3033, %v2968
        %v3035 = vpop.permute.xlu0 %3034
        %3038 = vset.pattern.permute.xlu0 0
        %3039 = vperm.xlu0 %3038, %v2969
        %v3040 = vpop.permute.xlu0 %3039
        %3043 = vset.pattern.permute.xlu0 0
        %3044 = vperm.xlu0 %3043, %v2970
        %v3045 = vpop.permute.xlu0 %3044
        %3048 = vset.pattern.permute.xlu0 0
        %3049 = vperm.xlu0 %3048, %v2971
        %v3050 = vpop.permute.xlu0 %3049
        %3053 = vset.pattern.permute.xlu0 0
        %3054 = vperm.xlu0 %3053, %v2972
        %v3055 = vpop.permute.xlu0 %3054
        %3058 = vset.pattern.permute.xlu0 0
        %3059 = vperm.xlu0 %3058, %v2973
        %v3060 = vpop.permute.xlu0 %3059
        %3063 = vset.pattern.permute.xlu0 0
        %3064 = vperm.xlu0 %3063, %v2974
        %v3065 = vpop.permute.xlu0 %3064
        %3068 = vset.pattern.permute.xlu0 0
        %3069 = vperm.xlu0 %3068, %v2975
        %v3070 = vpop.permute.xlu0 %3069
        %3073 = vset.pattern.permute.xlu0 0
        %3074 = vperm.xlu0 %3073, %v2976
        %v3075 = vpop.permute.xlu0 %3074
        %3078 = vset.pattern.permute.xlu0 0
        %3079 = vperm.xlu0 %3078, %v2977
        %v3080 = vpop.permute.xlu0 %3079
        %3083 = vset.pattern.permute.xlu0 0
        %3084 = vperm.xlu0 %3083, %v2978
        %v3085 = vpop.permute.xlu0 %3084
        %3088 = vset.pattern.permute.xlu0 0
        %3089 = vperm.xlu0 %3088, %v2979
        %v3090 = vpop.permute.xlu0 %3089
        %3093 = vset.pattern.permute.xlu0 0
        %3094 = vperm.xlu0 %3093, %v2980
        %v3095 = vpop.permute.xlu0 %3094
        %3098 = vset.pattern.permute.xlu0 0
        %3099 = vperm.xlu0 %3098, %v2981
        %v3100 = vpop.permute.xlu0 %3099
        %3103 = vset.pattern.permute.xlu0 0
        %3104 = vperm.xlu0 %3103, %v2982
        %v3105 = vpop.permute.xlu0 %3104
        %3108 = vset.pattern.permute.xlu0 0
        %3109 = vperm.xlu0 %3108, %v2983
        %v3110 = vpop.permute.xlu0 %3109
        %3113 = vset.pattern.permute.xlu0 0
        %3114 = vperm.xlu0 %3113, %v2984
        %v3115 = vpop.permute.xlu0 %3114
        %3118 = vset.pattern.permute.xlu0 0
        %3119 = vperm.xlu0 %3118, %v2985
        %v3120 = vpop.permute.xlu0 %3119
        %3123 = vset.pattern.permute.xlu0 0
        %3124 = vperm.xlu0 %3123, %v2986
        %v3125 = vpop.permute.xlu0 %3124
        %3128 = vset.pattern.permute.xlu0 0
        %3129 = vperm.xlu0 %3128, %v2987
        %v3130 = vpop.permute.xlu0 %3129
        %3133 = vset.pattern.permute.xlu0 0
        %3134 = vperm.xlu0 %3133, %v2988
        %v3135 = vpop.permute.xlu0 %3134
        %3138 = vset.pattern.permute.xlu0 0
        %3139 = vperm.xlu0 %3138, %v2989
        %v3140 = vpop.permute.xlu0 %3139
        %3143 = vset.pattern.permute.xlu0 0
        %3144 = vperm.xlu0 %3143, %v2990
        %v3145 = vpop.permute.xlu0 %3144
        %3148 = vset.pattern.permute.xlu0 0
        %3149 = vperm.xlu0 %3148, %v2991
        %v3150 = vpop.permute.xlu0 %3149
        %v3152 = vmul.f32 %v2656, %v2995
        %v3153 = vmul.f32 %v2657, %v3000
        %v3154 = vmul.f32 %v2658, %v3005
        %v3155 = vmul.f32 %v2659, %v3010
        %v3156 = vmul.f32 %v2660, %v3015
        %v3157 = vmul.f32 %v2661, %v3020
        %v3158 = vmul.f32 %v2662, %v3025
        %v3159 = vmul.f32 %v2663, %v3030
        %v3160 = vmul.f32 %v2664, %v3035
        %v3161 = vmul.f32 %v2665, %v3040
        %v3162 = vmul.f32 %v2666, %v3045
        %v3163 = vmul.f32 %v2667, %v3050
        %v3164 = vmul.f32 %v2668, %v3055
        %v3165 = vmul.f32 %v2669, %v3060
        %v3166 = vmul.f32 %v2670, %v3065
        %v3167 = vmul.f32 %v2671, %v3070
        %v3168 = vmul.f32 %v2672, %v3075
        %v3169 = vmul.f32 %v2673, %v3080
        %v3170 = vmul.f32 %v2674, %v3085
        %v3171 = vmul.f32 %v2675, %v3090
        %v3172 = vmul.f32 %v2676, %v3095
        %v3173 = vmul.f32 %v2677, %v3100
        %v3174 = vmul.f32 %v2678, %v3105
        %v3175 = vmul.f32 %v2679, %v3110
        %v3176 = vmul.f32 %v2680, %v3115
        %v3177 = vmul.f32 %v2681, %v3120
        %v3178 = vmul.f32 %v2682, %v3125
        %v3179 = vmul.f32 %v2683, %v3130
        %v3180 = vmul.f32 %v2684, %v3135
        %v3181 = vmul.f32 %v2685, %v3140
        %v3182 = vmul.f32 %v2686, %v3145
        %v3183 = vmul.f32 %v2687, %v3150
        %v3184 = vadd.f32 %v3152, %v3153
        %v3185 = vadd.f32 %v3184, %v3154
        %v3186 = vadd.f32 %v3185, %v3155
        %v3187 = vadd.f32 %v3186, %v3156
        %v3188 = vadd.f32 %v3187, %v3157
        %v3189 = vadd.f32 %v3188, %v3158
        %v3190 = vadd.f32 %v3189, %v3159
        %v3191 = vadd.f32 %v3190, %v3160
        %v3192 = vadd.f32 %v3191, %v3161
        %v3193 = vadd.f32 %v3192, %v3162
        %v3194 = vadd.f32 %v3193, %v3163
        %v3195 = vadd.f32 %v3194, %v3164
        %v3196 = vadd.f32 %v3195, %v3165
        %v3197 = vadd.f32 %v3196, %v3166
        %v3198 = vadd.f32 %v3197, %v3167
        %v3199 = vadd.f32 %v3198, %v3168
        %v3200 = vadd.f32 %v3199, %v3169
        %v3201 = vadd.f32 %v3200, %v3170
        %v3202 = vadd.f32 %v3201, %v3171
        %v3203 = vadd.f32 %v3202, %v3172
        %v3204 = vadd.f32 %v3203, %v3173
        %v3205 = vadd.f32 %v3204, %v3174
        %v3206 = vadd.f32 %v3205, %v3175
        %v3207 = vadd.f32 %v3206, %v3176
        %v3208 = vadd.f32 %v3207, %v3177
        %v3209 = vadd.f32 %v3208, %v3178
        %v3210 = vadd.f32 %v3209, %v3179
        %v3211 = vadd.f32 %v3210, %v3180
        %v3212 = vadd.f32 %v3211, %v3181
        %v3213 = vadd.f32 %v3212, %v3182
        %v3214 = vadd.f32 %v3213, %v3183
        %v3215 = vrot.slane %v3214, 4
        %v3216 = vadd.f32 %v3214, %v3215
        %v3217 = vrot.slane %v3216, 2
        %v3218 = vadd.f32 %v3216, %v3217
        %v3219 = vrot.slane %v3218, 1
        %v3220 = vadd.f32 %v3218, %v3219
        %v3221 = vld [vmem:[#allocation3] sm:$0x1]
        %3223 = vset.pattern.permute.xlu0 0
        %3224 = vperm.xlu0 %3223, %v3221
        %v3225 = vpop.permute.xlu0 %3224
        %v3227 = vlaneseq
        %v3228 = vshrl.u32 %v3227, 7
        %v3229 = vsub.s32 0, %v3228
        %v3230 = vrot.slane %v3225, %v3229
        %v3231 = vadd.f32 %v3220, %v3230
        %3232 = vst [vmem:[%s430] sm:$0x1] %v2959
        %3233 = vst [vmem:[%s430 + $0x1] sm:$0x1] %v3231
        %p3234 = scmp.lt.s32.totalorder %s26, 1
        %s3235 = scalar_select %p3234, %s26, 1
        %s3236 = smul.addr %s3235, 2
        %s3237 = scalar_lea.vmem %s11, %s3236
        // Predicated region
        $region103: #{critic_forward.1} parent=97 // pred_check
          %p3238 = pneg %p280
        $region104: #{critic_forward.1} parent=97 // pred_check_branch
          %3240 = sbr.rel (%p3238) target = $region106
        $region105: #{critic_forward.1} parent=97 // pred_region
          _
        $region106: #{critic_forward.1} parent=97 // pred_fallthru
          _
      $region98: #{critic_forward.1} parent=5 // pred_fallthru
        _
      %p3241 = scmp.le.s32.totalorder 2, %s21
      // Predicated region
      $region107: #{critic_forward.1} parent=5 // pred_check
        %p3242 = pneg %p3241
      $region108: #{critic_forward.1} parent=5 // pred_check_branch
        %3244 = sbr.rel (%p3242) target = $region110
      $region109: #{critic_forward.1} parent=5 // pred_region
        %s3245 = ssub.s32 %s21, 2
        // Predicated region
        $region111: #{critic_forward.1} parent=109 // pred_check
          %p3246 = pneg %p286
        $region112: #{critic_forward.1} parent=109 // pred_check_branch
          %3248 = sbr.rel (%p3246) target = $region114
        $region113: #{critic_forward.1} parent=109 // pred_region
          %p3249 = scmp.lt.s32.totalorder %s27, 1
          %s3250 = scalar_select %p3249, %s27, 1
          %s3251 = smul.addr %s3250, 2
          %s3252 = scalar_lea.vmem %s11, %s3251
        $region114: #{critic_forward.1} parent=109 // pred_fallthru
          _
      $region110: #{critic_forward.1} parent=5 // pred_fallthru
        _
    $region6: #{critic_forward.1} parent=1 // loop_footer
      %s25 = sadd.s32 1, %s21
    $region7: #{critic_forward.1} parent=1 // loop_footer_branch
      %20 = sbr.rel target = $region3
    $region8: #{critic_forward.1} parent=1 // loop_exit
      _

</llo_original>
